<compile_context>
chip_gen: v7x
topology: tpu7x:2x2x1
jax: 0.10.0
libtpu: 0.0.40
codegen_flags: <defaults>
</compile_context>

<pallas_src>
import functools

import jax
import jax.numpy as jnp
from jax import lax
from jax.experimental import pallas as pl
from jax.experimental.pallas import tpu as pltpu


def _timegan_kernel(n_layers, hidden_dim, seq_len, batch_pad, activation, *refs):
    """refs = x_flat, [wih_t, whh_t, b]*n_layers, lin_w_t, lin_b, out, seq_scr, gate_scr."""
    x_ref = refs[0]                                   # (T*Bp, D)
    layer_refs = refs[1:1 + 3 * n_layers]
    lin_w_ref = refs[1 + 3 * n_layers]                # (H, out_dim)
    lin_b_ref = refs[2 + 3 * n_layers]                # (1, out_dim)
    out_ref = refs[3 + 3 * n_layers]                  # (T*Bp, out_dim)
    seq_scr = refs[4 + 3 * n_layers]                  # (T*Bp, H)  layer output sequence
    gate_scr = refs[5 + 3 * n_layers]                 # (T*Bp, 4H) precomputed x@Wih + b

    H = hidden_dim
    T = seq_len
    Bp = batch_pad

    # Layers outer, time inner.  Each layer first does ONE batched matmul for
    # the input->hidden contribution of every time step, then runs the serial
    # recurrence with only the h_prev @ Whh matmul on the critical path.
    for l in range(n_layers):
        wih_t = layer_refs[3 * l][...]       # (in_l, 4H)  pre-transposed
        whh_t = layer_refs[3 * l + 1][...]   # (H, 4H)     pre-transposed
        b = layer_refs[3 * l + 2][...]       # (1, 4H)     b_ih + b_hh

        seq_in = x_ref[...] if l == 0 else seq_scr[...]
        gate_scr[...] = (
            jnp.dot(seq_in, wih_t, preferred_element_type=jnp.float32) + b)

        def step(t, carry, whh_t=whh_t):
            h_prev, c_prev = carry
            row = pl.multiple_of(t * Bp, Bp)
            g = (gate_scr[pl.ds(row, Bp), :]
                 + jnp.dot(h_prev, whh_t, preferred_element_type=jnp.float32))
            # Two full-width transcendental passes over the (Bp, 4H) gate
            # block instead of four quarter-lane launches.
            sg = jax.nn.sigmoid(g)   # holds i, f, o gates
            tg = jnp.tanh(g)         # holds g gate
            # PyTorch LSTM gate order: i, f, g, o
            i_g = sg[:, 0 * H:1 * H]
            f_g = sg[:, 1 * H:2 * H]
            g_g = tg[:, 2 * H:3 * H]
            o_g = sg[:, 3 * H:4 * H]
            c_new = f_g * c_prev + i_g * g_g
            h_new = o_g * jnp.tanh(c_new)
            seq_scr[pl.ds(row, Bp), :] = h_new
            return (h_new, c_new)

        h0 = jnp.zeros((Bp, H), jnp.float32)
        c0 = jnp.zeros((Bp, H), jnp.float32)
        lax.fori_loop(0, T, step, (h0, c0), unroll=(T <= 16))

    # Final linear projection for all time steps at once, plus optional
    # activation, then one contiguous writeback.
    y = (jnp.dot(seq_scr[...], lin_w_ref[...], preferred_element_type=jnp.float32)
         + lin_b_ref[...])
    if activation == "sigmoid":
        y = jax.nn.sigmoid(y)
    elif activation == "tanh":
        y = jnp.tanh(y)
    # activation is None -> identity (matches the PyTorch forward's None branch)
    out_ref[...] = y.astype(out_ref.dtype)


def timegan_forward(x, params, *, n_layers, hidden_dim, out_dim, activation=None):
    """x: (B, T, input_dim) float32 -> (B, T, out_dim)."""
    B, T, D = x.shape
    Bp = ((B + 7) // 8) * 8          # pad batch to a sublane multiple

    x_tm = jnp.transpose(x, (1, 0, 2))                   # (T, B, D) time-major
    if Bp != B:
        x_tm = jnp.pad(x_tm, ((0, 0), (0, Bp - B), (0, 0)))
    x_flat = x_tm.reshape(T * Bp, D)                     # (T*Bp, D)

    inputs = [x_flat]
    for l in range(n_layers):
        wih, whh, bih, bhh = params["lstm"][l]
        inputs += [
            wih.T,                                       # (in_l, 4H)
            whh.T,                                       # (H, 4H)
            (bih + bhh).reshape(1, 4 * hidden_dim),      # (1, 4H)
        ]
    lw, lb = params["linear"]
    inputs += [lw.T, lb.reshape(1, out_dim)]             # (H, out), (1, out)

    kernel = functools.partial(
        _timegan_kernel, n_layers, hidden_dim, T, Bp, activation)

    vmem_spec = lambda: pl.BlockSpec(memory_space=pltpu.MemorySpace.VMEM)

    # Single grid point: whole problem (inputs, weights, output, scratch) fits
    # comfortably in VMEM on v5e/v6e/v7x at these sizes.
    out_flat = pl.pallas_call(
        kernel,
        out_shape=jax.ShapeDtypeStruct((T * Bp, out_dim), x.dtype),
        in_specs=[vmem_spec() for _ in inputs],
        out_specs=vmem_spec(),
        scratch_shapes=[
            pltpu.VMEM((T * Bp, hidden_dim), jnp.float32),      # layer hidden sequence
            pltpu.VMEM((T * Bp, 4 * hidden_dim), jnp.float32),  # precomputed x@Wih + b
        ],
    )(*inputs)

    out_tm = out_flat.reshape(T, Bp, out_dim)[:, :B, :]
    return jnp.transpose(out_tm, (1, 0, 2))              # (B, T, out_dim)


def timegan_reference(x, params, *, n_layers, hidden_dim, out_dim, activation=None):
    """Pure-JAX reference for correctness checking."""
    B, T, D = x.shape
    h_all = x
    for l in range(n_layers):
        wih, whh, bih, bhh = params["lstm"][l]

        def step(carry, xt, wih=wih, whh=whh, bih=bih, bhh=bhh):
            h, c = carry
            gates = xt @ wih.T + bih + h @ whh.T + bhh
            H = hidden_dim
            i_g = jax.nn.sigmoid(gates[:, :H])
            f_g = jax.nn.sigmoid(gates[:, H:2 * H])
            g_g = jnp.tanh(gates[:, 2 * H:3 * H])
            o_g = jax.nn.sigmoid(gates[:, 3 * H:])
            c = f_g * c + i_g * g_g
            h = o_g * jnp.tanh(c)
            return (h, c), h

        h0 = jnp.zeros((B, hidden_dim), jnp.float32)
        c0 = jnp.zeros((B, hidden_dim), jnp.float32)
        _, hs = lax.scan(step, (h0, c0), jnp.transpose(h_all, (1, 0, 2)))
        h_all = jnp.transpose(hs, (1, 0, 2))

    lw, lb = params["linear"]
    y = h_all @ lw.T + lb
    if activation == "sigmoid":
        y = jax.nn.sigmoid(y)
    elif activation == "tanh":
        y = jnp.tanh(y)
    return y


def init_params(key, input_dim, hidden_dim, n_layers, out_dim):
    """Deterministic synthetic init matching nn.LSTM / nn.Linear shapes."""
    params = {"lstm": [], "linear": None}
    for l in range(n_layers):
        in_l = input_dim if l == 0 else hidden_dim
        key, k1, k2, k3, k4 = jax.random.split(key, 5)
        scale = 1.0 / jnp.sqrt(hidden_dim)
        wih = jax.random.uniform(k1, (4 * hidden_dim, in_l), jnp.float32, -scale, scale)
        whh = jax.random.uniform(k2, (4 * hidden_dim, hidden_dim), jnp.float32, -scale, scale)
        bih = jax.random.uniform(k3, (4 * hidden_dim,), jnp.float32, -scale, scale)
        bhh = jax.random.uniform(k4, (4 * hidden_dim,), jnp.float32, -scale, scale)
        params["lstm"].append((wih, whh, bih, bhh))
    key, k1, k2 = jax.random.split(key, 3)
    scale = 1.0 / jnp.sqrt(hidden_dim)
    lw = jax.random.uniform(k1, (out_dim, hidden_dim), jnp.float32, -scale, scale)
    lb = jax.random.uniform(k2, (out_dim,), jnp.float32, -scale, scale)
    params["linear"] = (lw, lb)
    return params


if __name__ == "__main__":
    # Small shapes consistent with the module's forward: batch=4, seq=8,
    # input_dim=8, hidden_dim=32, n_layers=2, out_dim=8, activation=None.
    B, T, D, H, L, OUT = 4, 8, 8, 32, 2, 8
    ACT = None  # matches the module's default (None -> identity)

    key = jax.random.PRNGKey(0)
    key, kx = jax.random.split(key)
    x = jax.random.normal(kx, (B, T, D), jnp.float32)
    params = init_params(key, D, H, L, OUT)

    out = timegan_forward(x, params, n_layers=L, hidden_dim=H, out_dim=OUT,
                          activation=ACT)
    out = jax.block_until_ready(out)

    ref = timegan_reference(x, params, n_layers=L, hidden_dim=H, out_dim=OUT,
                            activation=ACT)
    assert out.shape == (B, T, OUT)
    assert jnp.allclose(out, ref, atol=1e-5, rtol=1e-5), \
        f"max err {jnp.max(jnp.abs(out - ref))}"

    print("KERNEL_OK")
</pallas_src>

<mosaic_0001>
module attributes {stable_mosaic.version = 11 : i64} {
  func.func @_timegan_kernel(%arg0: memref<64x8xf32, #tpu.memory_space<vmem>>, %arg1: memref<8x128xf32, #tpu.memory_space<vmem>>, %arg2: memref<32x128xf32, #tpu.memory_space<vmem>>, %arg3: memref<1x128xf32, #tpu.memory_space<vmem>>, %arg4: memref<32x128xf32, #tpu.memory_space<vmem>>, %arg5: memref<32x128xf32, #tpu.memory_space<vmem>>, %arg6: memref<1x128xf32, #tpu.memory_space<vmem>>, %arg7: memref<32x8xf32, #tpu.memory_space<vmem>>, %arg8: memref<1x8xf32, #tpu.memory_space<vmem>>, %arg9: memref<64x8xf32, #tpu.memory_space<vmem>>, %arg10: memref<64x32xf32, #tpu.memory_space<vmem>>, %arg11: memref<64x128xf32, #tpu.memory_space<vmem>>) attributes {dimension_semantics = [], scalar_prefetch = 0 : i64, scratch_operands = 2 : i64, tpu.core_type = #tpu.core_type<tc>} {
    %c0 = arith.constant 0 : index
    %c0_0 = arith.constant 0 : index
    %0 = vector.load %arg1[%c0, %c0_0] : memref<8x128xf32, #tpu.memory_space<vmem>>, vector<8x128xf32>
    %c0_1 = arith.constant 0 : index
    %c0_2 = arith.constant 0 : index
    %1 = vector.load %arg2[%c0_1, %c0_2] : memref<32x128xf32, #tpu.memory_space<vmem>>, vector<32x128xf32>
    %c0_3 = arith.constant 0 : index
    %c0_4 = arith.constant 0 : index
    %2 = vector.load %arg3[%c0_3, %c0_4] : memref<1x128xf32, #tpu.memory_space<vmem>>, vector<1x128xf32>
    %c0_5 = arith.constant 0 : index
    %c0_6 = arith.constant 0 : index
    %3 = vector.load %arg0[%c0_5, %c0_6] : memref<64x8xf32, #tpu.memory_space<vmem>>, vector<64x8xf32>
    %cst = arith.constant dense<0.000000e+00> : vector<64x128xf32>
    %4 = tpu.matmul %3, %0, %cst {dimension_numbers = #tpu.dot_dimension_numbers<[1], [0], [0], [1], [0, 0, 1, 1], [], []>} : vector<64x8xf32>, vector<8x128xf32>, vector<64x128xf32> -> vector<64x128xf32>
    %5 = vector.broadcast %2 : vector<1x128xf32> to vector<64x128xf32>
    %6 = arith.addf %4, %5 : vector<64x128xf32>
    %c0_7 = arith.constant 0 : index
    %c0_8 = arith.constant 0 : index
    %7 = vector.load %arg11[%c0_7, %c0_8] : memref<64x128xf32, #tpu.memory_space<vmem>>, vector<64x128xf32>
    tpu.vector_store %arg11[%c0_7, %c0_8], %6 {strides = array<i32>} : memref<64x128xf32, #tpu.memory_space<vmem>>, vector<64x128xf32>,
    %cst_9 = arith.constant 0.000000e+00 : f32
    %8 = vector.broadcast %cst_9 : f32 to vector<8x32xf32>
    %cst_10 = arith.constant 0.000000e+00 : f32
    %9 = vector.broadcast %cst_10 : f32 to vector<8x32xf32>
    %c0_i32 = arith.constant 0 : i32
    %c8_i32 = arith.constant 8 : i32
    %10 = arith.muli %c0_i32, %c8_i32 : i32
    %11 = tpu.assume_multiple %10, 8 : i32
    %12 = arith.index_cast %11 : i32 to index
    %c0_11 = arith.constant 0 : index
    %13 = vector.load %arg11[%12, %c0_11] : memref<64x128xf32, #tpu.memory_space<vmem>>, vector<8x128xf32>
    %cst_12 = arith.constant dense<0.000000e+00> : vector<8x128xf32>
    %14 = tpu.matmul %8, %1, %cst_12 {dimension_numbers = #tpu.dot_dimension_numbers<[1], [0], [0], [1], [0, 0, 1, 1], [], []>} : vector<8x32xf32>, vector<32x128xf32>, vector<8x128xf32> -> vector<8x128xf32>
    %15 = arith.addf %13, %14 : vector<8x128xf32>
    %16 = arith.negf %15 : vector<8x128xf32>
    %17 = math.exp %16 : vector<8x128xf32>
    %cst_13 = arith.constant 1.000000e+00 : f32
    %18 = vector.broadcast %cst_13 : f32 to vector<8x128xf32>
    %19 = arith.addf %18, %17 : vector<8x128xf32>
    %20 = arith.divf %18, %19 : vector<8x128xf32>
    %21 = math.tanh %15 : vector<8x128xf32>
    %22 = vector.extract_strided_slice %20 {offsets = [0, 0], sizes = [8, 32], strides = [1, 1]} : vector<8x128xf32> to vector<8x32xf32>
    %23 = vector.extract_strided_slice %20 {offsets = [0, 32], sizes = [8, 32], strides = [1, 1]} : vector<8x128xf32> to vector<8x32xf32>
    %24 = vector.extract_strided_slice %21 {offsets = [0, 64], sizes = [8, 32], strides = [1, 1]} : vector<8x128xf32> to vector<8x32xf32>
    %25 = vector.extract_strided_slice %20 {offsets = [0, 96], sizes = [8, 32], strides = [1, 1]} : vector<8x128xf32> to vector<8x32xf32>
    %26 = arith.mulf %23, %9 : vector<8x32xf32>
    %27 = arith.mulf %22, %24 : vector<8x32xf32>
    %28 = arith.addf %26, %27 : vector<8x32xf32>
    %29 = math.tanh %28 : vector<8x32xf32>
    %30 = arith.mulf %25, %29 : vector<8x32xf32>
    %31 = arith.index_cast %11 : i32 to index
    %c0_14 = arith.constant 0 : index
    %32 = vector.load %arg10[%31, %c0_14] : memref<64x32xf32, #tpu.memory_space<vmem>>, vector<8x32xf32>
    tpu.vector_store %arg10[%31, %c0_14], %30 {strides = array<i32>} : memref<64x32xf32, #tpu.memory_space<vmem>>, vector<8x32xf32>,
    %c1_i32 = arith.constant 1 : i32
    %c8_i32_15 = arith.constant 8 : i32
    %33 = arith.muli %c1_i32, %c8_i32_15 : i32
    %34 = tpu.assume_multiple %33, 8 : i32
    %35 = arith.index_cast %34 : i32 to index
    %c0_16 = arith.constant 0 : index
    %36 = vector.load %arg11[%35, %c0_16] : memref<64x128xf32, #tpu.memory_space<vmem>>, vector<8x128xf32>
    %cst_17 = arith.constant dense<0.000000e+00> : vector<8x128xf32>
    %37 = tpu.matmul %30, %1, %cst_17 {dimension_numbers = #tpu.dot_dimension_numbers<[1], [0], [0], [1], [0, 0, 1, 1], [], []>} : vector<8x32xf32>, vector<32x128xf32>, vector<8x128xf32> -> vector<8x128xf32>
    %38 = arith.addf %36, %37 : vector<8x128xf32>
    %39 = arith.negf %38 : vector<8x128xf32>
    %40 = math.exp %39 : vector<8x128xf32>
    %cst_18 = arith.constant 1.000000e+00 : f32
    %41 = vector.broadcast %cst_18 : f32 to vector<8x128xf32>
    %42 = arith.addf %41, %40 : vector<8x128xf32>
    %43 = arith.divf %41, %42 : vector<8x128xf32>
    %44 = math.tanh %38 : vector<8x128xf32>
    %45 = vector.extract_strided_slice %43 {offsets = [0, 0], sizes = [8, 32], strides = [1, 1]} : vector<8x128xf32> to vector<8x32xf32>
    %46 = vector.extract_strided_slice %43 {offsets = [0, 32], sizes = [8, 32], strides = [1, 1]} : vector<8x128xf32> to vector<8x32xf32>
    %47 = vector.extract_strided_slice %44 {offsets = [0, 64], sizes = [8, 32], strides = [1, 1]} : vector<8x128xf32> to vector<8x32xf32>
    %48 = vector.extract_strided_slice %43 {offsets = [0, 96], sizes = [8, 32], strides = [1, 1]} : vector<8x128xf32> to vector<8x32xf32>
    %49 = arith.mulf %46, %28 : vector<8x32xf32>
    %50 = arith.mulf %45, %47 : vector<8x32xf32>
    %51 = arith.addf %49, %50 : vector<8x32xf32>
    %52 = math.tanh %51 : vector<8x32xf32>
    %53 = arith.mulf %48, %52 : vector<8x32xf32>
    %54 = arith.index_cast %34 : i32 to index
    %c0_19 = arith.constant 0 : index
    %55 = vector.load %arg10[%54, %c0_19] : memref<64x32xf32, #tpu.memory_space<vmem>>, vector<8x32xf32>
    tpu.vector_store %arg10[%54, %c0_19], %53 {strides = array<i32>} : memref<64x32xf32, #tpu.memory_space<vmem>>, vector<8x32xf32>,
    %c2_i32 = arith.constant 2 : i32
    %c8_i32_20 = arith.constant 8 : i32
    %56 = arith.muli %c2_i32, %c8_i32_20 : i32
    %57 = tpu.assume_multiple %56, 8 : i32
    %58 = arith.index_cast %57 : i32 to index
    %c0_21 = arith.constant 0 : index
    %59 = vector.load %arg11[%58, %c0_21] : memref<64x128xf32, #tpu.memory_space<vmem>>, vector<8x128xf32>
    %cst_22 = arith.constant dense<0.000000e+00> : vector<8x128xf32>
    %60 = tpu.matmul %53, %1, %cst_22 {dimension_numbers = #tpu.dot_dimension_numbers<[1], [0], [0], [1], [0, 0, 1, 1], [], []>} : vector<8x32xf32>, vector<32x128xf32>, vector<8x128xf32> -> vector<8x128xf32>
    %61 = arith.addf %59, %60 : vector<8x128xf32>
    %62 = arith.negf %61 : vector<8x128xf32>
    %63 = math.exp %62 : vector<8x128xf32>
    %cst_23 = arith.constant 1.000000e+00 : f32
    %64 = vector.broadcast %cst_23 : f32 to vector<8x128xf32>
    %65 = arith.addf %64, %63 : vector<8x128xf32>
    %66 = arith.divf %64, %65 : vector<8x128xf32>
    %67 = math.tanh %61 : vector<8x128xf32>
    %68 = vector.extract_strided_slice %66 {offsets = [0, 0], sizes = [8, 32], strides = [1, 1]} : vector<8x128xf32> to vector<8x32xf32>
    %69 = vector.extract_strided_slice %66 {offsets = [0, 32], sizes = [8, 32], strides = [1, 1]} : vector<8x128xf32> to vector<8x32xf32>
    %70 = vector.extract_strided_slice %67 {offsets = [0, 64], sizes = [8, 32], strides = [1, 1]} : vector<8x128xf32> to vector<8x32xf32>
    %71 = vector.extract_strided_slice %66 {offsets = [0, 96], sizes = [8, 32], strides = [1, 1]} : vector<8x128xf32> to vector<8x32xf32>
    %72 = arith.mulf %69, %51 : vector<8x32xf32>
    %73 = arith.mulf %68, %70 : vector<8x32xf32>
    %74 = arith.addf %72, %73 : vector<8x32xf32>
    %75 = math.tanh %74 : vector<8x32xf32>
    %76 = arith.mulf %71, %75 : vector<8x32xf32>
    %77 = arith.index_cast %57 : i32 to index
    %c0_24 = arith.constant 0 : index
    %78 = vector.load %arg10[%77, %c0_24] : memref<64x32xf32, #tpu.memory_space<vmem>>, vector<8x32xf32>
    tpu.vector_store %arg10[%77, %c0_24], %76 {strides = array<i32>} : memref<64x32xf32, #tpu.memory_space<vmem>>, vector<8x32xf32>,
    %c3_i32 = arith.constant 3 : i32
    %c8_i32_25 = arith.constant 8 : i32
    %79 = arith.muli %c3_i32, %c8_i32_25 : i32
    %80 = tpu.assume_multiple %79, 8 : i32
    %81 = arith.index_cast %80 : i32 to index
    %c0_26 = arith.constant 0 : index
    %82 = vector.load %arg11[%81, %c0_26] : memref<64x128xf32, #tpu.memory_space<vmem>>, vector<8x128xf32>
    %cst_27 = arith.constant dense<0.000000e+00> : vector<8x128xf32>
    %83 = tpu.matmul %76, %1, %cst_27 {dimension_numbers = #tpu.dot_dimension_numbers<[1], [0], [0], [1], [0, 0, 1, 1], [], []>} : vector<8x32xf32>, vector<32x128xf32>, vector<8x128xf32> -> vector<8x128xf32>
    %84 = arith.addf %82, %83 : vector<8x128xf32>
    %85 = arith.negf %84 : vector<8x128xf32>
    %86 = math.exp %85 : vector<8x128xf32>
    %cst_28 = arith.constant 1.000000e+00 : f32
    %87 = vector.broadcast %cst_28 : f32 to vector<8x128xf32>
    %88 = arith.addf %87, %86 : vector<8x128xf32>
    %89 = arith.divf %87, %88 : vector<8x128xf32>
    %90 = math.tanh %84 : vector<8x128xf32>
    %91 = vector.extract_strided_slice %89 {offsets = [0, 0], sizes = [8, 32], strides = [1, 1]} : vector<8x128xf32> to vector<8x32xf32>
    %92 = vector.extract_strided_slice %89 {offsets = [0, 32], sizes = [8, 32], strides = [1, 1]} : vector<8x128xf32> to vector<8x32xf32>
    %93 = vector.extract_strided_slice %90 {offsets = [0, 64], sizes = [8, 32], strides = [1, 1]} : vector<8x128xf32> to vector<8x32xf32>
    %94 = vector.extract_strided_slice %89 {offsets = [0, 96], sizes = [8, 32], strides = [1, 1]} : vector<8x128xf32> to vector<8x32xf32>
    %95 = arith.mulf %92, %74 : vector<8x32xf32>
    %96 = arith.mulf %91, %93 : vector<8x32xf32>
    %97 = arith.addf %95, %96 : vector<8x32xf32>
    %98 = math.tanh %97 : vector<8x32xf32>
    %99 = arith.mulf %94, %98 : vector<8x32xf32>
    %100 = arith.index_cast %80 : i32 to index
    %c0_29 = arith.constant 0 : index
    %101 = vector.load %arg10[%100, %c0_29] : memref<64x32xf32, #tpu.memory_space<vmem>>, vector<8x32xf32>
    tpu.vector_store %arg10[%100, %c0_29], %99 {strides = array<i32>} : memref<64x32xf32, #tpu.memory_space<vmem>>, vector<8x32xf32>,
    %c4_i32 = arith.constant 4 : i32
    %c8_i32_30 = arith.constant 8 : i32
    %102 = arith.muli %c4_i32, %c8_i32_30 : i32
    %103 = tpu.assume_multiple %102, 8 : i32
    %104 = arith.index_cast %103 : i32 to index
    %c0_31 = arith.constant 0 : index
    %105 = vector.load %arg11[%104, %c0_31] : memref<64x128xf32, #tpu.memory_space<vmem>>, vector<8x128xf32>
    %cst_32 = arith.constant dense<0.000000e+00> : vector<8x128xf32>
    %106 = tpu.matmul %99, %1, %cst_32 {dimension_numbers = #tpu.dot_dimension_numbers<[1], [0], [0], [1], [0, 0, 1, 1], [], []>} : vector<8x32xf32>, vector<32x128xf32>, vector<8x128xf32> -> vector<8x128xf32>
    %107 = arith.addf %105, %106 : vector<8x128xf32>
    %108 = arith.negf %107 : vector<8x128xf32>
    %109 = math.exp %108 : vector<8x128xf32>
    %cst_33 = arith.constant 1.000000e+00 : f32
    %110 = vector.broadcast %cst_33 : f32 to vector<8x128xf32>
    %111 = arith.addf %110, %109 : vector<8x128xf32>
    %112 = arith.divf %110, %111 : vector<8x128xf32>
    %113 = math.tanh %107 : vector<8x128xf32>
    %114 = vector.extract_strided_slice %112 {offsets = [0, 0], sizes = [8, 32], strides = [1, 1]} : vector<8x128xf32> to vector<8x32xf32>
    %115 = vector.extract_strided_slice %112 {offsets = [0, 32], sizes = [8, 32], strides = [1, 1]} : vector<8x128xf32> to vector<8x32xf32>
    %116 = vector.extract_strided_slice %113 {offsets = [0, 64], sizes = [8, 32], strides = [1, 1]} : vector<8x128xf32> to vector<8x32xf32>
    %117 = vector.extract_strided_slice %112 {offsets = [0, 96], sizes = [8, 32], strides = [1, 1]} : vector<8x128xf32> to vector<8x32xf32>
    %118 = arith.mulf %115, %97 : vector<8x32xf32>
    %119 = arith.mulf %114, %116 : vector<8x32xf32>
    %120 = arith.addf %118, %119 : vector<8x32xf32>
    %121 = math.tanh %120 : vector<8x32xf32>
    %122 = arith.mulf %117, %121 : vector<8x32xf32>
    %123 = arith.index_cast %103 : i32 to index
    %c0_34 = arith.constant 0 : index
    %124 = vector.load %arg10[%123, %c0_34] : memref<64x32xf32, #tpu.memory_space<vmem>>, vector<8x32xf32>
    tpu.vector_store %arg10[%123, %c0_34], %122 {strides = array<i32>} : memref<64x32xf32, #tpu.memory_space<vmem>>, vector<8x32xf32>,
    %c5_i32 = arith.constant 5 : i32
    %c8_i32_35 = arith.constant 8 : i32
    %125 = arith.muli %c5_i32, %c8_i32_35 : i32
    %126 = tpu.assume_multiple %125, 8 : i32
    %127 = arith.index_cast %126 : i32 to index
    %c0_36 = arith.constant 0 : index
    %128 = vector.load %arg11[%127, %c0_36] : memref<64x128xf32, #tpu.memory_space<vmem>>, vector<8x128xf32>
    %cst_37 = arith.constant dense<0.000000e+00> : vector<8x128xf32>
    %129 = tpu.matmul %122, %1, %cst_37 {dimension_numbers = #tpu.dot_dimension_numbers<[1], [0], [0], [1], [0, 0, 1, 1], [], []>} : vector<8x32xf32>, vector<32x128xf32>, vector<8x128xf32> -> vector<8x128xf32>
    %130 = arith.addf %128, %129 : vector<8x128xf32>
    %131 = arith.negf %130 : vector<8x128xf32>
    %132 = math.exp %131 : vector<8x128xf32>
    %cst_38 = arith.constant 1.000000e+00 : f32
    %133 = vector.broadcast %cst_38 : f32 to vector<8x128xf32>
    %134 = arith.addf %133, %132 : vector<8x128xf32>
    %135 = arith.divf %133, %134 : vector<8x128xf32>
    %136 = math.tanh %130 : vector<8x128xf32>
    %137 = vector.extract_strided_slice %135 {offsets = [0, 0], sizes = [8, 32], strides = [1, 1]} : vector<8x128xf32> to vector<8x32xf32>
    %138 = vector.extract_strided_slice %135 {offsets = [0, 32], sizes = [8, 32], strides = [1, 1]} : vector<8x128xf32> to vector<8x32xf32>
    %139 = vector.extract_strided_slice %136 {offsets = [0, 64], sizes = [8, 32], strides = [1, 1]} : vector<8x128xf32> to vector<8x32xf32>
    %140 = vector.extract_strided_slice %135 {offsets = [0, 96], sizes = [8, 32], strides = [1, 1]} : vector<8x128xf32> to vector<8x32xf32>
    %141 = arith.mulf %138, %120 : vector<8x32xf32>
    %142 = arith.mulf %137, %139 : vector<8x32xf32>
    %143 = arith.addf %141, %142 : vector<8x32xf32>
    %144 = math.tanh %143 : vector<8x32xf32>
    %145 = arith.mulf %140, %144 : vector<8x32xf32>
    %146 = arith.index_cast %126 : i32 to index
    %c0_39 = arith.constant 0 : index
    %147 = vector.load %arg10[%146, %c0_39] : memref<64x32xf32, #tpu.memory_space<vmem>>, vector<8x32xf32>
    tpu.vector_store %arg10[%146, %c0_39], %145 {strides = array<i32>} : memref<64x32xf32, #tpu.memory_space<vmem>>, vector<8x32xf32>,
    %c6_i32 = arith.constant 6 : i32
    %c8_i32_40 = arith.constant 8 : i32
    %148 = arith.muli %c6_i32, %c8_i32_40 : i32
    %149 = tpu.assume_multiple %148, 8 : i32
    %150 = arith.index_cast %149 : i32 to index
    %c0_41 = arith.constant 0 : index
    %151 = vector.load %arg11[%150, %c0_41] : memref<64x128xf32, #tpu.memory_space<vmem>>, vector<8x128xf32>
    %cst_42 = arith.constant dense<0.000000e+00> : vector<8x128xf32>
    %152 = tpu.matmul %145, %1, %cst_42 {dimension_numbers = #tpu.dot_dimension_numbers<[1], [0], [0], [1], [0, 0, 1, 1], [], []>} : vector<8x32xf32>, vector<32x128xf32>, vector<8x128xf32> -> vector<8x128xf32>
    %153 = arith.addf %151, %152 : vector<8x128xf32>
    %154 = arith.negf %153 : vector<8x128xf32>
    %155 = math.exp %154 : vector<8x128xf32>
    %cst_43 = arith.constant 1.000000e+00 : f32
    %156 = vector.broadcast %cst_43 : f32 to vector<8x128xf32>
    %157 = arith.addf %156, %155 : vector<8x128xf32>
    %158 = arith.divf %156, %157 : vector<8x128xf32>
    %159 = math.tanh %153 : vector<8x128xf32>
    %160 = vector.extract_strided_slice %158 {offsets = [0, 0], sizes = [8, 32], strides = [1, 1]} : vector<8x128xf32> to vector<8x32xf32>
    %161 = vector.extract_strided_slice %158 {offsets = [0, 32], sizes = [8, 32], strides = [1, 1]} : vector<8x128xf32> to vector<8x32xf32>
    %162 = vector.extract_strided_slice %159 {offsets = [0, 64], sizes = [8, 32], strides = [1, 1]} : vector<8x128xf32> to vector<8x32xf32>
    %163 = vector.extract_strided_slice %158 {offsets = [0, 96], sizes = [8, 32], strides = [1, 1]} : vector<8x128xf32> to vector<8x32xf32>
    %164 = arith.mulf %161, %143 : vector<8x32xf32>
    %165 = arith.mulf %160, %162 : vector<8x32xf32>
    %166 = arith.addf %164, %165 : vector<8x32xf32>
    %167 = math.tanh %166 : vector<8x32xf32>
    %168 = arith.mulf %163, %167 : vector<8x32xf32>
    %169 = arith.index_cast %149 : i32 to index
    %c0_44 = arith.constant 0 : index
    %170 = vector.load %arg10[%169, %c0_44] : memref<64x32xf32, #tpu.memory_space<vmem>>, vector<8x32xf32>
    tpu.vector_store %arg10[%169, %c0_44], %168 {strides = array<i32>} : memref<64x32xf32, #tpu.memory_space<vmem>>, vector<8x32xf32>,
    %c7_i32 = arith.constant 7 : i32
    %c8_i32_45 = arith.constant 8 : i32
    %171 = arith.muli %c7_i32, %c8_i32_45 : i32
    %172 = tpu.assume_multiple %171, 8 : i32
    %173 = arith.index_cast %172 : i32 to index
    %c0_46 = arith.constant 0 : index
    %174 = vector.load %arg11[%173, %c0_46] : memref<64x128xf32, #tpu.memory_space<vmem>>, vector<8x128xf32>
    %cst_47 = arith.constant dense<0.000000e+00> : vector<8x128xf32>
    %175 = tpu.matmul %168, %1, %cst_47 {dimension_numbers = #tpu.dot_dimension_numbers<[1], [0], [0], [1], [0, 0, 1, 1], [], []>} : vector<8x32xf32>, vector<32x128xf32>, vector<8x128xf32> -> vector<8x128xf32>
    %176 = arith.addf %174, %175 : vector<8x128xf32>
    %177 = arith.negf %176 : vector<8x128xf32>
    %178 = math.exp %177 : vector<8x128xf32>
    %cst_48 = arith.constant 1.000000e+00 : f32
    %179 = vector.broadcast %cst_48 : f32 to vector<8x128xf32>
    %180 = arith.addf %179, %178 : vector<8x128xf32>
    %181 = arith.divf %179, %180 : vector<8x128xf32>
    %182 = math.tanh %176 : vector<8x128xf32>
    %183 = vector.extract_strided_slice %181 {offsets = [0, 0], sizes = [8, 32], strides = [1, 1]} : vector<8x128xf32> to vector<8x32xf32>
    %184 = vector.extract_strided_slice %181 {offsets = [0, 32], sizes = [8, 32], strides = [1, 1]} : vector<8x128xf32> to vector<8x32xf32>
    %185 = vector.extract_strided_slice %182 {offsets = [0, 64], sizes = [8, 32], strides = [1, 1]} : vector<8x128xf32> to vector<8x32xf32>
    %186 = vector.extract_strided_slice %181 {offsets = [0, 96], sizes = [8, 32], strides = [1, 1]} : vector<8x128xf32> to vector<8x32xf32>
    %187 = arith.mulf %184, %166 : vector<8x32xf32>
    %188 = arith.mulf %183, %185 : vector<8x32xf32>
    %189 = arith.addf %187, %188 : vector<8x32xf32>
    %190 = math.tanh %189 : vector<8x32xf32>
    %191 = arith.mulf %186, %190 : vector<8x32xf32>
    %192 = arith.index_cast %172 : i32 to index
    %c0_49 = arith.constant 0 : index
    %193 = vector.load %arg10[%192, %c0_49] : memref<64x32xf32, #tpu.memory_space<vmem>>, vector<8x32xf32>
    tpu.vector_store %arg10[%192, %c0_49], %191 {strides = array<i32>} : memref<64x32xf32, #tpu.memory_space<vmem>>, vector<8x32xf32>,
    %c8_i32_50 = arith.constant 8 : i32
    %c0_51 = arith.constant 0 : index
    %c0_52 = arith.constant 0 : index
    %194 = vector.load %arg4[%c0_51, %c0_52] : memref<32x128xf32, #tpu.memory_space<vmem>>, vector<32x128xf32>
    %c0_53 = arith.constant 0 : index
    %c0_54 = arith.constant 0 : index
    %195 = vector.load %arg5[%c0_53, %c0_54] : memref<32x128xf32, #tpu.memory_space<vmem>>, vector<32x128xf32>
    %c0_55 = arith.constant 0 : index
    %c0_56 = arith.constant 0 : index
    %196 = vector.load %arg6[%c0_55, %c0_56] : memref<1x128xf32, #tpu.memory_space<vmem>>, vector<1x128xf32>
    %c0_57 = arith.constant 0 : index
    %c0_58 = arith.constant 0 : index
    %197 = vector.load %arg10[%c0_57, %c0_58] : memref<64x32xf32, #tpu.memory_space<vmem>>, vector<64x32xf32>
    %cst_59 = arith.constant dense<0.000000e+00> : vector<64x128xf32>
    %198 = tpu.matmul %197, %194, %cst_59 {dimension_numbers = #tpu.dot_dimension_numbers<[1], [0], [0], [1], [0, 0, 1, 1], [], []>} : vector<64x32xf32>, vector<32x128xf32>, vector<64x128xf32> -> vector<64x128xf32>
    %199 = vector.broadcast %196 : vector<1x128xf32> to vector<64x128xf32>
    %200 = arith.addf %198, %199 : vector<64x128xf32>
    %c0_60 = arith.constant 0 : index
    %c0_61 = arith.constant 0 : index
    %201 = vector.load %arg11[%c0_60, %c0_61] : memref<64x128xf32, #tpu.memory_space<vmem>>, vector<64x128xf32>
    tpu.vector_store %arg11[%c0_60, %c0_61], %200 {strides = array<i32>} : memref<64x128xf32, #tpu.memory_space<vmem>>, vector<64x128xf32>,
    %cst_62 = arith.constant 0.000000e+00 : f32
    %202 = vector.broadcast %cst_62 : f32 to vector<8x32xf32>
    %cst_63 = arith.constant 0.000000e+00 : f32
    %203 = vector.broadcast %cst_63 : f32 to vector<8x32xf32>
    %c0_i32_64 = arith.constant 0 : i32
    %c8_i32_65 = arith.constant 8 : i32
    %204 = arith.muli %c0_i32_64, %c8_i32_65 : i32
    %205 = tpu.assume_multiple %204, 8 : i32
    %206 = arith.index_cast %205 : i32 to index
    %c0_66 = arith.constant 0 : index
    %207 = vector.load %arg11[%206, %c0_66] : memref<64x128xf32, #tpu.memory_space<vmem>>, vector<8x128xf32>
    %cst_67 = arith.constant dense<0.000000e+00> : vector<8x128xf32>
    %208 = tpu.matmul %202, %195, %cst_67 {dimension_numbers = #tpu.dot_dimension_numbers<[1], [0], [0], [1], [0, 0, 1, 1], [], []>} : vector<8x32xf32>, vector<32x128xf32>, vector<8x128xf32> -> vector<8x128xf32>
    %209 = arith.addf %207, %208 : vector<8x128xf32>
    %210 = arith.negf %209 : vector<8x128xf32>
    %211 = math.exp %210 : vector<8x128xf32>
    %cst_68 = arith.constant 1.000000e+00 : f32
    %212 = vector.broadcast %cst_68 : f32 to vector<8x128xf32>
    %213 = arith.addf %212, %211 : vector<8x128xf32>
    %214 = arith.divf %212, %213 : vector<8x128xf32>
    %215 = math.tanh %209 : vector<8x128xf32>
    %216 = vector.extract_strided_slice %214 {offsets = [0, 0], sizes = [8, 32], strides = [1, 1]} : vector<8x128xf32> to vector<8x32xf32>
    %217 = vector.extract_strided_slice %214 {offsets = [0, 32], sizes = [8, 32], strides = [1, 1]} : vector<8x128xf32> to vector<8x32xf32>
    %218 = vector.extract_strided_slice %215 {offsets = [0, 64], sizes = [8, 32], strides = [1, 1]} : vector<8x128xf32> to vector<8x32xf32>
    %219 = vector.extract_strided_slice %214 {offsets = [0, 96], sizes = [8, 32], strides = [1, 1]} : vector<8x128xf32> to vector<8x32xf32>
    %220 = arith.mulf %217, %203 : vector<8x32xf32>
    %221 = arith.mulf %216, %218 : vector<8x32xf32>
    %222 = arith.addf %220, %221 : vector<8x32xf32>
    %223 = math.tanh %222 : vector<8x32xf32>
    %224 = arith.mulf %219, %223 : vector<8x32xf32>
    %225 = arith.index_cast %205 : i32 to index
    %c0_69 = arith.constant 0 : index
    %226 = vector.load %arg10[%225, %c0_69] : memref<64x32xf32, #tpu.memory_space<vmem>>, vector<8x32xf32>
    tpu.vector_store %arg10[%225, %c0_69], %224 {strides = array<i32>} : memref<64x32xf32, #tpu.memory_space<vmem>>, vector<8x32xf32>,
    %c1_i32_70 = arith.constant 1 : i32
    %c8_i32_71 = arith.constant 8 : i32
    %227 = arith.muli %c1_i32_70, %c8_i32_71 : i32
    %228 = tpu.assume_multiple %227, 8 : i32
    %229 = arith.index_cast %228 : i32 to index
    %c0_72 = arith.constant 0 : index
    %230 = vector.load %arg11[%229, %c0_72] : memref<64x128xf32, #tpu.memory_space<vmem>>, vector<8x128xf32>
    %cst_73 = arith.constant dense<0.000000e+00> : vector<8x128xf32>
    %231 = tpu.matmul %224, %195, %cst_73 {dimension_numbers = #tpu.dot_dimension_numbers<[1], [0], [0], [1], [0, 0, 1, 1], [], []>} : vector<8x32xf32>, vector<32x128xf32>, vector<8x128xf32> -> vector<8x128xf32>
    %232 = arith.addf %230, %231 : vector<8x128xf32>
    %233 = arith.negf %232 : vector<8x128xf32>
    %234 = math.exp %233 : vector<8x128xf32>
    %cst_74 = arith.constant 1.000000e+00 : f32
    %235 = vector.broadcast %cst_74 : f32 to vector<8x128xf32>
    %236 = arith.addf %235, %234 : vector<8x128xf32>
    %237 = arith.divf %235, %236 : vector<8x128xf32>
    %238 = math.tanh %232 : vector<8x128xf32>
    %239 = vector.extract_strided_slice %237 {offsets = [0, 0], sizes = [8, 32], strides = [1, 1]} : vector<8x128xf32> to vector<8x32xf32>
    %240 = vector.extract_strided_slice %237 {offsets = [0, 32], sizes = [8, 32], strides = [1, 1]} : vector<8x128xf32> to vector<8x32xf32>
    %241 = vector.extract_strided_slice %238 {offsets = [0, 64], sizes = [8, 32], strides = [1, 1]} : vector<8x128xf32> to vector<8x32xf32>
    %242 = vector.extract_strided_slice %237 {offsets = [0, 96], sizes = [8, 32], strides = [1, 1]} : vector<8x128xf32> to vector<8x32xf32>
    %243 = arith.mulf %240, %222 : vector<8x32xf32>
    %244 = arith.mulf %239, %241 : vector<8x32xf32>
    %245 = arith.addf %243, %244 : vector<8x32xf32>
    %246 = math.tanh %245 : vector<8x32xf32>
    %247 = arith.mulf %242, %246 : vector<8x32xf32>
    %248 = arith.index_cast %228 : i32 to index
    %c0_75 = arith.constant 0 : index
    %249 = vector.load %arg10[%248, %c0_75] : memref<64x32xf32, #tpu.memory_space<vmem>>, vector<8x32xf32>
    tpu.vector_store %arg10[%248, %c0_75], %247 {strides = array<i32>} : memref<64x32xf32, #tpu.memory_space<vmem>>, vector<8x32xf32>,
    %c2_i32_76 = arith.constant 2 : i32
    %c8_i32_77 = arith.constant 8 : i32
    %250 = arith.muli %c2_i32_76, %c8_i32_77 : i32
    %251 = tpu.assume_multiple %250, 8 : i32
    %252 = arith.index_cast %251 : i32 to index
    %c0_78 = arith.constant 0 : index
    %253 = vector.load %arg11[%252, %c0_78] : memref<64x128xf32, #tpu.memory_space<vmem>>, vector<8x128xf32>
    %cst_79 = arith.constant dense<0.000000e+00> : vector<8x128xf32>
    %254 = tpu.matmul %247, %195, %cst_79 {dimension_numbers = #tpu.dot_dimension_numbers<[1], [0], [0], [1], [0, 0, 1, 1], [], []>} : vector<8x32xf32>, vector<32x128xf32>, vector<8x128xf32> -> vector<8x128xf32>
    %255 = arith.addf %253, %254 : vector<8x128xf32>
    %256 = arith.negf %255 : vector<8x128xf32>
    %257 = math.exp %256 : vector<8x128xf32>
    %cst_80 = arith.constant 1.000000e+00 : f32
    %258 = vector.broadcast %cst_80 : f32 to vector<8x128xf32>
    %259 = arith.addf %258, %257 : vector<8x128xf32>
    %260 = arith.divf %258, %259 : vector<8x128xf32>
    %261 = math.tanh %255 : vector<8x128xf32>
    %262 = vector.extract_strided_slice %260 {offsets = [0, 0], sizes = [8, 32], strides = [1, 1]} : vector<8x128xf32> to vector<8x32xf32>
    %263 = vector.extract_strided_slice %260 {offsets = [0, 32], sizes = [8, 32], strides = [1, 1]} : vector<8x128xf32> to vector<8x32xf32>
    %264 = vector.extract_strided_slice %261 {offsets = [0, 64], sizes = [8, 32], strides = [1, 1]} : vector<8x128xf32> to vector<8x32xf32>
    %265 = vector.extract_strided_slice %260 {offsets = [0, 96], sizes = [8, 32], strides = [1, 1]} : vector<8x128xf32> to vector<8x32xf32>
    %266 = arith.mulf %263, %245 : vector<8x32xf32>
    %267 = arith.mulf %262, %264 : vector<8x32xf32>
    %268 = arith.addf %266, %267 : vector<8x32xf32>
    %269 = math.tanh %268 : vector<8x32xf32>
    %270 = arith.mulf %265, %269 : vector<8x32xf32>
    %271 = arith.index_cast %251 : i32 to index
    %c0_81 = arith.constant 0 : index
    %272 = vector.load %arg10[%271, %c0_81] : memref<64x32xf32, #tpu.memory_space<vmem>>, vector<8x32xf32>
    tpu.vector_store %arg10[%271, %c0_81], %270 {strides = array<i32>} : memref<64x32xf32, #tpu.memory_space<vmem>>, vector<8x32xf32>,
    %c3_i32_82 = arith.constant 3 : i32
    %c8_i32_83 = arith.constant 8 : i32
    %273 = arith.muli %c3_i32_82, %c8_i32_83 : i32
    %274 = tpu.assume_multiple %273, 8 : i32
    %275 = arith.index_cast %274 : i32 to index
    %c0_84 = arith.constant 0 : index
    %276 = vector.load %arg11[%275, %c0_84] : memref<64x128xf32, #tpu.memory_space<vmem>>, vector<8x128xf32>
    %cst_85 = arith.constant dense<0.000000e+00> : vector<8x128xf32>
    %277 = tpu.matmul %270, %195, %cst_85 {dimension_numbers = #tpu.dot_dimension_numbers<[1], [0], [0], [1], [0, 0, 1, 1], [], []>} : vector<8x32xf32>, vector<32x128xf32>, vector<8x128xf32> -> vector<8x128xf32>
    %278 = arith.addf %276, %277 : vector<8x128xf32>
    %279 = arith.negf %278 : vector<8x128xf32>
    %280 = math.exp %279 : vector<8x128xf32>
    %cst_86 = arith.constant 1.000000e+00 : f32
    %281 = vector.broadcast %cst_86 : f32 to vector<8x128xf32>
    %282 = arith.addf %281, %280 : vector<8x128xf32>
    %283 = arith.divf %281, %282 : vector<8x128xf32>
    %284 = math.tanh %278 : vector<8x128xf32>
    %285 = vector.extract_strided_slice %283 {offsets = [0, 0], sizes = [8, 32], strides = [1, 1]} : vector<8x128xf32> to vector<8x32xf32>
    %286 = vector.extract_strided_slice %283 {offsets = [0, 32], sizes = [8, 32], strides = [1, 1]} : vector<8x128xf32> to vector<8x32xf32>
    %287 = vector.extract_strided_slice %284 {offsets = [0, 64], sizes = [8, 32], strides = [1, 1]} : vector<8x128xf32> to vector<8x32xf32>
    %288 = vector.extract_strided_slice %283 {offsets = [0, 96], sizes = [8, 32], strides = [1, 1]} : vector<8x128xf32> to vector<8x32xf32>
    %289 = arith.mulf %286, %268 : vector<8x32xf32>
    %290 = arith.mulf %285, %287 : vector<8x32xf32>
    %291 = arith.addf %289, %290 : vector<8x32xf32>
    %292 = math.tanh %291 : vector<8x32xf32>
    %293 = arith.mulf %288, %292 : vector<8x32xf32>
    %294 = arith.index_cast %274 : i32 to index
    %c0_87 = arith.constant 0 : index
    %295 = vector.load %arg10[%294, %c0_87] : memref<64x32xf32, #tpu.memory_space<vmem>>, vector<8x32xf32>
    tpu.vector_store %arg10[%294, %c0_87], %293 {strides = array<i32>} : memref<64x32xf32, #tpu.memory_space<vmem>>, vector<8x32xf32>,
    %c4_i32_88 = arith.constant 4 : i32
    %c8_i32_89 = arith.constant 8 : i32
    %296 = arith.muli %c4_i32_88, %c8_i32_89 : i32
    %297 = tpu.assume_multiple %296, 8 : i32
    %298 = arith.index_cast %297 : i32 to index
    %c0_90 = arith.constant 0 : index
    %299 = vector.load %arg11[%298, %c0_90] : memref<64x128xf32, #tpu.memory_space<vmem>>, vector<8x128xf32>
    %cst_91 = arith.constant dense<0.000000e+00> : vector<8x128xf32>
    %300 = tpu.matmul %293, %195, %cst_91 {dimension_numbers = #tpu.dot_dimension_numbers<[1], [0], [0], [1], [0, 0, 1, 1], [], []>} : vector<8x32xf32>, vector<32x128xf32>, vector<8x128xf32> -> vector<8x128xf32>
    %301 = arith.addf %299, %300 : vector<8x128xf32>
    %302 = arith.negf %301 : vector<8x128xf32>
    %303 = math.exp %302 : vector<8x128xf32>
    %cst_92 = arith.constant 1.000000e+00 : f32
    %304 = vector.broadcast %cst_92 : f32 to vector<8x128xf32>
    %305 = arith.addf %304, %303 : vector<8x128xf32>
    %306 = arith.divf %304, %305 : vector<8x128xf32>
    %307 = math.tanh %301 : vector<8x128xf32>
    %308 = vector.extract_strided_slice %306 {offsets = [0, 0], sizes = [8, 32], strides = [1, 1]} : vector<8x128xf32> to vector<8x32xf32>
    %309 = vector.extract_strided_slice %306 {offsets = [0, 32], sizes = [8, 32], strides = [1, 1]} : vector<8x128xf32> to vector<8x32xf32>
    %310 = vector.extract_strided_slice %307 {offsets = [0, 64], sizes = [8, 32], strides = [1, 1]} : vector<8x128xf32> to vector<8x32xf32>
    %311 = vector.extract_strided_slice %306 {offsets = [0, 96], sizes = [8, 32], strides = [1, 1]} : vector<8x128xf32> to vector<8x32xf32>
    %312 = arith.mulf %309, %291 : vector<8x32xf32>
    %313 = arith.mulf %308, %310 : vector<8x32xf32>
    %314 = arith.addf %312, %313 : vector<8x32xf32>
    %315 = math.tanh %314 : vector<8x32xf32>
    %316 = arith.mulf %311, %315 : vector<8x32xf32>
    %317 = arith.index_cast %297 : i32 to index
    %c0_93 = arith.constant 0 : index
    %318 = vector.load %arg10[%317, %c0_93] : memref<64x32xf32, #tpu.memory_space<vmem>>, vector<8x32xf32>
    tpu.vector_store %arg10[%317, %c0_93], %316 {strides = array<i32>} : memref<64x32xf32, #tpu.memory_space<vmem>>, vector<8x32xf32>,
    %c5_i32_94 = arith.constant 5 : i32
    %c8_i32_95 = arith.constant 8 : i32
    %319 = arith.muli %c5_i32_94, %c8_i32_95 : i32
    %320 = tpu.assume_multiple %319, 8 : i32
    %321 = arith.index_cast %320 : i32 to index
    %c0_96 = arith.constant 0 : index
    %322 = vector.load %arg11[%321, %c0_96] : memref<64x128xf32, #tpu.memory_space<vmem>>, vector<8x128xf32>
    %cst_97 = arith.constant dense<0.000000e+00> : vector<8x128xf32>
    %323 = tpu.matmul %316, %195, %cst_97 {dimension_numbers = #tpu.dot_dimension_numbers<[1], [0], [0], [1], [0, 0, 1, 1], [], []>} : vector<8x32xf32>, vector<32x128xf32>, vector<8x128xf32> -> vector<8x128xf32>
    %324 = arith.addf %322, %323 : vector<8x128xf32>
    %325 = arith.negf %324 : vector<8x128xf32>
    %326 = math.exp %325 : vector<8x128xf32>
    %cst_98 = arith.constant 1.000000e+00 : f32
    %327 = vector.broadcast %cst_98 : f32 to vector<8x128xf32>
    %328 = arith.addf %327, %326 : vector<8x128xf32>
    %329 = arith.divf %327, %328 : vector<8x128xf32>
    %330 = math.tanh %324 : vector<8x128xf32>
    %331 = vector.extract_strided_slice %329 {offsets = [0, 0], sizes = [8, 32], strides = [1, 1]} : vector<8x128xf32> to vector<8x32xf32>
    %332 = vector.extract_strided_slice %329 {offsets = [0, 32], sizes = [8, 32], strides = [1, 1]} : vector<8x128xf32> to vector<8x32xf32>
    %333 = vector.extract_strided_slice %330 {offsets = [0, 64], sizes = [8, 32], strides = [1, 1]} : vector<8x128xf32> to vector<8x32xf32>
    %334 = vector.extract_strided_slice %329 {offsets = [0, 96], sizes = [8, 32], strides = [1, 1]} : vector<8x128xf32> to vector<8x32xf32>
    %335 = arith.mulf %332, %314 : vector<8x32xf32>
    %336 = arith.mulf %331, %333 : vector<8x32xf32>
    %337 = arith.addf %335, %336 : vector<8x32xf32>
    %338 = math.tanh %337 : vector<8x32xf32>
    %339 = arith.mulf %334, %338 : vector<8x32xf32>
    %340 = arith.index_cast %320 : i32 to index
    %c0_99 = arith.constant 0 : index
    %341 = vector.load %arg10[%340, %c0_99] : memref<64x32xf32, #tpu.memory_space<vmem>>, vector<8x32xf32>
    tpu.vector_store %arg10[%340, %c0_99], %339 {strides = array<i32>} : memref<64x32xf32, #tpu.memory_space<vmem>>, vector<8x32xf32>,
    %c6_i32_100 = arith.constant 6 : i32
    %c8_i32_101 = arith.constant 8 : i32
    %342 = arith.muli %c6_i32_100, %c8_i32_101 : i32
    %343 = tpu.assume_multiple %342, 8 : i32
    %344 = arith.index_cast %343 : i32 to index
    %c0_102 = arith.constant 0 : index
    %345 = vector.load %arg11[%344, %c0_102] : memref<64x128xf32, #tpu.memory_space<vmem>>, vector<8x128xf32>
    %cst_103 = arith.constant dense<0.000000e+00> : vector<8x128xf32>
    %346 = tpu.matmul %339, %195, %cst_103 {dimension_numbers = #tpu.dot_dimension_numbers<[1], [0], [0], [1], [0, 0, 1, 1], [], []>} : vector<8x32xf32>, vector<32x128xf32>, vector<8x128xf32> -> vector<8x128xf32>
    %347 = arith.addf %345, %346 : vector<8x128xf32>
    %348 = arith.negf %347 : vector<8x128xf32>
    %349 = math.exp %348 : vector<8x128xf32>
    %cst_104 = arith.constant 1.000000e+00 : f32
    %350 = vector.broadcast %cst_104 : f32 to vector<8x128xf32>
    %351 = arith.addf %350, %349 : vector<8x128xf32>
    %352 = arith.divf %350, %351 : vector<8x128xf32>
    %353 = math.tanh %347 : vector<8x128xf32>
    %354 = vector.extract_strided_slice %352 {offsets = [0, 0], sizes = [8, 32], strides = [1, 1]} : vector<8x128xf32> to vector<8x32xf32>
    %355 = vector.extract_strided_slice %352 {offsets = [0, 32], sizes = [8, 32], strides = [1, 1]} : vector<8x128xf32> to vector<8x32xf32>
    %356 = vector.extract_strided_slice %353 {offsets = [0, 64], sizes = [8, 32], strides = [1, 1]} : vector<8x128xf32> to vector<8x32xf32>
    %357 = vector.extract_strided_slice %352 {offsets = [0, 96], sizes = [8, 32], strides = [1, 1]} : vector<8x128xf32> to vector<8x32xf32>
    %358 = arith.mulf %355, %337 : vector<8x32xf32>
    %359 = arith.mulf %354, %356 : vector<8x32xf32>
    %360 = arith.addf %358, %359 : vector<8x32xf32>
    %361 = math.tanh %360 : vector<8x32xf32>
    %362 = arith.mulf %357, %361 : vector<8x32xf32>
    %363 = arith.index_cast %343 : i32 to index
    %c0_105 = arith.constant 0 : index
    %364 = vector.load %arg10[%363, %c0_105] : memref<64x32xf32, #tpu.memory_space<vmem>>, vector<8x32xf32>
    tpu.vector_store %arg10[%363, %c0_105], %362 {strides = array<i32>} : memref<64x32xf32, #tpu.memory_space<vmem>>, vector<8x32xf32>,
    %c7_i32_106 = arith.constant 7 : i32
    %c8_i32_107 = arith.constant 8 : i32
    %365 = arith.muli %c7_i32_106, %c8_i32_107 : i32
    %366 = tpu.assume_multiple %365, 8 : i32
    %367 = arith.index_cast %366 : i32 to index
    %c0_108 = arith.constant 0 : index
    %368 = vector.load %arg11[%367, %c0_108] : memref<64x128xf32, #tpu.memory_space<vmem>>, vector<8x128xf32>
    %cst_109 = arith.constant dense<0.000000e+00> : vector<8x128xf32>
    %369 = tpu.matmul %362, %195, %cst_109 {dimension_numbers = #tpu.dot_dimension_numbers<[1], [0], [0], [1], [0, 0, 1, 1], [], []>} : vector<8x32xf32>, vector<32x128xf32>, vector<8x128xf32> -> vector<8x128xf32>
    %370 = arith.addf %368, %369 : vector<8x128xf32>
    %371 = arith.negf %370 : vector<8x128xf32>
    %372 = math.exp %371 : vector<8x128xf32>
    %cst_110 = arith.constant 1.000000e+00 : f32
    %373 = vector.broadcast %cst_110 : f32 to vector<8x128xf32>
    %374 = arith.addf %373, %372 : vector<8x128xf32>
    %375 = arith.divf %373, %374 : vector<8x128xf32>
    %376 = math.tanh %370 : vector<8x128xf32>
    %377 = vector.extract_strided_slice %375 {offsets = [0, 0], sizes = [8, 32], strides = [1, 1]} : vector<8x128xf32> to vector<8x32xf32>
    %378 = vector.extract_strided_slice %375 {offsets = [0, 32], sizes = [8, 32], strides = [1, 1]} : vector<8x128xf32> to vector<8x32xf32>
    %379 = vector.extract_strided_slice %376 {offsets = [0, 64], sizes = [8, 32], strides = [1, 1]} : vector<8x128xf32> to vector<8x32xf32>
    %380 = vector.extract_strided_slice %375 {offsets = [0, 96], sizes = [8, 32], strides = [1, 1]} : vector<8x128xf32> to vector<8x32xf32>
    %381 = arith.mulf %378, %360 : vector<8x32xf32>
    %382 = arith.mulf %377, %379 : vector<8x32xf32>
    %383 = arith.addf %381, %382 : vector<8x32xf32>
    %384 = math.tanh %383 : vector<8x32xf32>
    %385 = arith.mulf %380, %384 : vector<8x32xf32>
    %386 = arith.index_cast %366 : i32 to index
    %c0_111 = arith.constant 0 : index
    %387 = vector.load %arg10[%386, %c0_111] : memref<64x32xf32, #tpu.memory_space<vmem>>, vector<8x32xf32>
    tpu.vector_store %arg10[%386, %c0_111], %385 {strides = array<i32>} : memref<64x32xf32, #tpu.memory_space<vmem>>, vector<8x32xf32>,
    %c8_i32_112 = arith.constant 8 : i32
    %c0_113 = arith.constant 0 : index
    %c0_114 = arith.constant 0 : index
    %388 = vector.load %arg10[%c0_113, %c0_114] : memref<64x32xf32, #tpu.memory_space<vmem>>, vector<64x32xf32>
    %c0_115 = arith.constant 0 : index
    %c0_116 = arith.constant 0 : index
    %389 = vector.load %arg7[%c0_115, %c0_116] : memref<32x8xf32, #tpu.memory_space<vmem>>, vector<32x8xf32>
    %cst_117 = arith.constant dense<0.000000e+00> : vector<64x8xf32>
    %390 = tpu.matmul %388, %389, %cst_117 {dimension_numbers = #tpu.dot_dimension_numbers<[1], [0], [0], [1], [0, 0, 1, 1], [], []>} : vector<64x32xf32>, vector<32x8xf32>, vector<64x8xf32> -> vector<64x8xf32>
    %c0_118 = arith.constant 0 : index
    %c0_119 = arith.constant 0 : index
    %391 = vector.load %arg8[%c0_118, %c0_119] : memref<1x8xf32, #tpu.memory_space<vmem>>, vector<1x8xf32>
    %392 = vector.broadcast %391 : vector<1x8xf32> to vector<64x8xf32>
    %393 = arith.addf %390, %392 : vector<64x8xf32>
    %c0_120 = arith.constant 0 : index
    %c0_121 = arith.constant 0 : index
    %394 = vector.load %arg9[%c0_120, %c0_121] : memref<64x8xf32, #tpu.memory_space<vmem>>, vector<64x8xf32>
    tpu.vector_store %arg9[%c0_120, %c0_121], %393 {strides = array<i32>} : memref<64x8xf32, #tpu.memory_space<vmem>>, vector<64x8xf32>,
    return
  }
}

</mosaic_0001>

<llo_original>
// kernel: tpu_custom_call.1
$region0: #{tpu_custom_call.1}
  #allocation0 [shape = 'u32[]', space=smem, size = 0x4, offset = 0x4, fixed_abs, tag = 'smem constant byte address 0x4 - core index']
  #allocation1 [shape = 'u32[144,128]{1,0:T(1,128)}', space=vmem, size = 0x12000, scoped, tag = 'internal scratch']
  #allocation2 [shape = 'f32[64,32]{1,0:T(8,128)}', space=vmem, size = 0x8000, scoped, tag = 'scratch operand']
  #allocation3 [shape = 'f32[64,128]{1,0:T(8,128)}', space=vmem, size = 0x8000, scoped, tag = 'scratch operand']
  %s0 = inlined_call_operand.vmem [shape: f32[64,8], index: 0, kind: input, shape index: {}]
  %s1 = inlined_call_operand.vmem [shape: f32[8,128], index: 1, kind: input, shape index: {}]
  %s2 = inlined_call_operand.vmem [shape: f32[32,128], index: 2, kind: input, shape index: {}]
  %s3 = inlined_call_operand.vmem [shape: f32[1,128], index: 3, kind: input, shape index: {}]
  %s4 = inlined_call_operand.vmem [shape: f32[32,128], index: 4, kind: input, shape index: {}]
  %s5 = inlined_call_operand.vmem [shape: f32[32,128], index: 5, kind: input, shape index: {}]
  %s6 = inlined_call_operand.vmem [shape: f32[1,128], index: 6, kind: input, shape index: {}]
  %s7 = inlined_call_operand.vmem [shape: f32[32,8], index: 7, kind: input, shape index: {}]
  %s8 = inlined_call_operand.vmem [shape: f32[1,8], index: 8, kind: input, shape index: {}]
  %s9 = inlined_call_operand.vmem [shape: f32[64,8], index: 9, kind: output, shape index: {}]
  %s10 = sld [smem:[#allocation0]]
  $region46: #{tpu_custom_call.1} parent=0
    _
  %s12 = ssub.s32 1, %s10
  %s13 = scalar_select 0, %s12, %s10
  // Predicated region
  $region2: #{tpu_custom_call.1} parent=0 // pred_check
    _
  $region3: #{tpu_custom_call.1} parent=0 // pred_check_branch
    %15 = sbr.rel (0) target = $region5
  $region4: #{tpu_custom_call.1} parent=0 // pred_region
    _
  $region5: #{tpu_custom_call.1} parent=0 // pred_fallthru
    _
  // Predicated region
  $region6: #{tpu_custom_call.1} parent=0 // pred_check
    _
  $region7: #{tpu_custom_call.1} parent=0 // pred_check_branch
    %17 = sbr.rel (0) target = $region9
  $region8: #{tpu_custom_call.1} parent=0 // pred_region
    _
  $region9: #{tpu_custom_call.1} parent=0 // pred_fallthru
    _
  // Predicated region
  $region10: #{tpu_custom_call.1} parent=0 // pred_check
    _
  $region11: #{tpu_custom_call.1} parent=0 // pred_check_branch
    %19 = sbr.rel (0) target = $region13
  $region12: #{tpu_custom_call.1} parent=0 // pred_region
    _
  $region13: #{tpu_custom_call.1} parent=0 // pred_fallthru
    _
  // Predicated region
  $region14: #{tpu_custom_call.1} parent=0 // pred_check
    _
  $region15: #{tpu_custom_call.1} parent=0 // pred_check_branch
    %21 = sbr.rel (0) target = $region17
  $region16: #{tpu_custom_call.1} parent=0 // pred_region
    _
  $region17: #{tpu_custom_call.1} parent=0 // pred_fallthru
    _
  // Predicated region
  $region18: #{tpu_custom_call.1} parent=0 // pred_check
    _
  $region19: #{tpu_custom_call.1} parent=0 // pred_check_branch
    %23 = sbr.rel (0) target = $region21
  $region20: #{tpu_custom_call.1} parent=0 // pred_region
    _
  $region21: #{tpu_custom_call.1} parent=0 // pred_fallthru
    _
  // Predicated region
  $region22: #{tpu_custom_call.1} parent=0 // pred_check
    _
  $region23: #{tpu_custom_call.1} parent=0 // pred_check_branch
    %25 = sbr.rel (0) target = $region25
  $region24: #{tpu_custom_call.1} parent=0 // pred_region
    _
  $region25: #{tpu_custom_call.1} parent=0 // pred_fallthru
    _
  // Predicated region
  $region26: #{tpu_custom_call.1} parent=0 // pred_check
    _
  $region27: #{tpu_custom_call.1} parent=0 // pred_check_branch
    %27 = sbr.rel (0) target = $region29
  $region28: #{tpu_custom_call.1} parent=0 // pred_region
    _
  $region29: #{tpu_custom_call.1} parent=0 // pred_fallthru
    _
  // Predicated region
  $region30: #{tpu_custom_call.1} parent=0 // pred_check
    _
  $region31: #{tpu_custom_call.1} parent=0 // pred_check_branch
    %29 = sbr.rel (0) target = $region33
  $region32: #{tpu_custom_call.1} parent=0 // pred_region
    _
  $region33: #{tpu_custom_call.1} parent=0 // pred_fallthru
    _
  // Predicated region
  $region34: #{tpu_custom_call.1} parent=0 // pred_check
    _
  $region35: #{tpu_custom_call.1} parent=0 // pred_check_branch
    %31 = sbr.rel (0) target = $region37
  $region36: #{tpu_custom_call.1} parent=0 // pred_region
    _
  $region37: #{tpu_custom_call.1} parent=0 // pred_fallthru
    _
  %v32 = vld [vmem:[%s1] sm:$0xff]
  %v33 = vld [vmem:[%s2] sm:$0xff]
  %v34 = vld [vmem:[%s2 + $0x8] sm:$0xff]
  %v35 = vld [vmem:[%s2 + $0x10] sm:$0xff]
  %v36 = vld [vmem:[%s2 + $0x18] sm:$0xff]
  %v37 = vld [vmem:[%s3] sm:$0x1]
  %v38 = vld [vmem:[%s0] sm:$0xff]
  %v39 = vld [vmem:[%s0 + $0x8] sm:$0xff]
  %v40 = vld [vmem:[%s0 + $0x10] sm:$0xff]
  %v41 = vld [vmem:[%s0 + $0x18] sm:$0xff]
  %v42 = vld [vmem:[%s0 + $0x20] sm:$0xff]
  %v43 = vld [vmem:[%s0 + $0x28] sm:$0xff]
  %v44 = vld [vmem:[%s0 + $0x30] sm:$0xff]
  %v45 = vld [vmem:[%s0 + $0x38] sm:$0xff]
  %v47 = vlaneseq
  %v48 = vshrl.u32 %v47, 7
  %v49 = vsub.s32 0, %v48
  %v50 = vrot.slane %v37, %v49
  %vm52 = vcmask 64512
  %v54 = vsel %vm52, %v38, 0
  %v57 = vsel %vm52, %v39, 0
  %v60 = vsel %vm52, %v40, 0
  %v63 = vsel %vm52, %v41, 0
  %v66 = vsel %vm52, %v42, 0
  %v69 = vsel %vm52, %v43, 0
  %v72 = vsel %vm52, %v44, 0
  %v75 = vsel %vm52, %v45, 0
  %77 = vmatprep.subr.mxu0 0.0
  %78 = vmatpush1.msra.mxu0 %v32
  %79 = vmatprep.subr.mxu0 0.0
  %80 = vmatpush1.msra.mxu0 0.0
  %81 = vmatprep.subr.mxu0 0.0
  %82 = vmatpush1.msra.mxu0 0.0
  %83 = vmatprep.subr.mxu0 0.0
  %84 = vmatpush1.msra.mxu0 0.0
  %85 = vmatprep.subr.mxu0 0.0
  %86 = vmatpush1.msra.mxu0 0.0
  %87 = vmatprep.subr.mxu0 0.0
  %88 = vmatpush1.msra.mxu0 0.0
  %89 = vmatprep.subr.mxu0 0.0
  %90 = vmatpush1.msra.mxu0 0.0
  %91 = vmatprep.subr.mxu0 0.0
  %92 = vmatpush1.msra.mxu0 0.0
  %93 = vmatprep.subr.mxu0 0.0
  %94 = vmatpush1.msra.mxu0 0.0
  %95 = vmatprep.subr.mxu0 0.0
  %96 = vmatpush1.msra.mxu0 0.0
  %97 = vmatprep.subr.mxu0 0.0
  %98 = vmatpush1.msra.mxu0 0.0
  %99 = vmatprep.subr.mxu0 0.0
  %100 = vmatpush1.msra.mxu0 0.0
  %101 = vmatprep.subr.mxu0 0.0
  %102 = vmatpush1.msra.mxu0 0.0
  %103 = vmatprep.subr.mxu0 0.0
  %104 = vmatpush1.msra.mxu0 0.0
  %105 = vmatprep.subr.mxu0 0.0
  %106 = vmatpush1.msra.mxu0 0.0
  %107 = vmatprep.subr.mxu0 0.0
  %108 = vmatpush1.msra.mxu0 0.0
  %109 = vmatprep.subr.mxu0 0.0
  %110 = vmatpush1.msra.mxu0 0.0
  %111 = vmatprep.subr.mxu0 0.0
  %112 = vmatpush1.msra.mxu0 0.0
  %113 = vmatprep.subr.mxu0 0.0
  %114 = vmatpush1.msra.mxu0 0.0
  %115 = vmatprep.subr.mxu0 0.0
  %116 = vmatpush1.msra.mxu0 0.0
  %117 = vmatprep.subr.mxu0 0.0
  %118 = vmatpush1.msra.mxu0 0.0
  %119 = vmatprep.subr.mxu0 0.0
  %120 = vmatpush1.msra.mxu0 0.0
  %121 = vmatprep.subr.mxu0 0.0
  %122 = vmatpush1.msra.mxu0 0.0
  %123 = vmatprep.subr.mxu0 0.0
  %124 = vmatpush1.msra.mxu0 0.0
  %125 = vmatprep.subr.mxu0 0.0
  %126 = vmatpush1.msra.mxu0 0.0
  %127 = vmatprep.subr.mxu0 0.0
  %128 = vmatpush1.msra.mxu0 0.0
  %129 = vmatprep.subr.mxu0 0.0
  %130 = vmatpush1.msra.mxu0 0.0
  %131 = vmatprep.subr.mxu0 0.0
  %132 = vmatpush1.msra.mxu0 0.0
  %133 = vmatprep.subr.mxu0 0.0
  %134 = vmatpush1.msra.mxu0 0.0
  %135 = vmatprep.subr.mxu0 0.0
  %136 = vmatpush1.msra.mxu0 0.0
  %137 = vmatprep.subr.mxu0 0.0
  %138 = vmatpush1.msra.mxu0 0.0
  %139 = vmatprep.subr.mxu0 0.0
  %140 = vmatpush1.msra.mxu0 0.0
  %141 = vmatprep.mubr.f32.mxu0 0.0
  %142 = vmatmul.mubr.f32.gmra.mrb[0].mxu0 %v54
  %v143 = vpop.f32.mrb[0].mxu0
  %v144 = vadd.f32 %v50, %v143
  %v145 = vpop.f32.mrb[0].mxu0
  %146 = vmatprep.mubr.f32.mxu0 0.0
  %147 = vmatmul.mubr.f32.gmra.mrb[0].mxu0 %v57
  %v148 = vpop.f32.mrb[0].mxu0
  %v149 = vadd.f32 %v50, %v148
  %v150 = vpop.f32.mrb[0].mxu0
  %151 = vmatprep.mubr.f32.mxu0 0.0
  %152 = vmatmul.mubr.f32.gmra.mrb[0].mxu0 %v60
  %v153 = vpop.f32.mrb[0].mxu0
  %v154 = vadd.f32 %v50, %v153
  %v155 = vpop.f32.mrb[0].mxu0
  %156 = vmatprep.mubr.f32.mxu0 0.0
  %157 = vmatmul.mubr.f32.gmra.mrb[0].mxu0 %v63
  %v158 = vpop.f32.mrb[0].mxu0
  %v159 = vadd.f32 %v50, %v158
  %v160 = vpop.f32.mrb[0].mxu0
  %161 = vmatprep.mubr.f32.mxu0 0.0
  %162 = vmatmul.mubr.f32.gmra.mrb[0].mxu0 %v66
  %v163 = vpop.f32.mrb[0].mxu0
  %v164 = vadd.f32 %v50, %v163
  %v165 = vpop.f32.mrb[0].mxu0
  %166 = vmatprep.mubr.f32.mxu0 0.0
  %167 = vmatmul.mubr.f32.gmra.mrb[0].mxu0 %v69
  %v168 = vpop.f32.mrb[0].mxu0
  %v169 = vadd.f32 %v50, %v168
  %v170 = vpop.f32.mrb[0].mxu0
  %171 = vmatprep.mubr.f32.mxu0 0.0
  %172 = vmatmul.mubr.f32.gmra.mrb[0].mxu0 %v72
  %v173 = vpop.f32.mrb[0].mxu0
  %v174 = vadd.f32 %v50, %v173
  %v175 = vpop.f32.mrb[0].mxu0
  %176 = vmatprep.mubr.f32.mxu0 0.0
  %177 = vmatmul.mubr.f32.gmra.mrb[0].mxu0 %v75
  %v178 = vpop.f32.mrb[0].mxu0
  %v179 = vadd.f32 %v50, %v178
  %v180 = vpop.f32.mrb[0].mxu0
  %181 = vdwg.mxu0
  %182 = vst [vmem:[#allocation3] sm:$0xff] %v144
  %183 = vst [vmem:[#allocation3 + $0x8] sm:$0xff] %v149
  %184 = vst [vmem:[#allocation3 + $0x10] sm:$0xff] %v154
  %185 = vst [vmem:[#allocation3 + $0x18] sm:$0xff] %v159
  %186 = vst [vmem:[#allocation3 + $0x20] sm:$0xff] %v164
  %187 = vst [vmem:[#allocation3 + $0x28] sm:$0xff] %v169
  %188 = vst [vmem:[#allocation3 + $0x30] sm:$0xff] %v174
  %189 = vst [vmem:[#allocation3 + $0x38] sm:$0xff] %v179
  %v190 = vld [vmem:[#allocation3] sm:$0xff]
  %vm191 = vcmask 261120
  %v193 = vsel %vm191, 0.0, 0
  %195 = vmatprep.subr.mxu0 0.0
  %196 = vmatpush1.msra.mxu0 %v33
  %197 = vmatprep.subr.mxu0 0.0
  %198 = vmatpush1.msra.mxu0 %v34
  %199 = vmatprep.subr.mxu0 0.0
  %200 = vmatpush1.msra.mxu0 %v35
  %201 = vmatprep.subr.mxu0 0.0
  %202 = vmatpush1.msra.mxu0 %v36
  %203 = vmatprep.subr.mxu0 0.0
  %204 = vmatpush1.msra.mxu0 0.0
  %205 = vmatprep.subr.mxu0 0.0
  %206 = vmatpush1.msra.mxu0 0.0
  %207 = vmatprep.subr.mxu0 0.0
  %208 = vmatpush1.msra.mxu0 0.0
  %209 = vmatprep.subr.mxu0 0.0
  %210 = vmatpush1.msra.mxu0 0.0
  %211 = vmatprep.subr.mxu0 0.0
  %212 = vmatpush1.msra.mxu0 0.0
  %213 = vmatprep.subr.mxu0 0.0
  %214 = vmatpush1.msra.mxu0 0.0
  %215 = vmatprep.subr.mxu0 0.0
  %216 = vmatpush1.msra.mxu0 0.0
  %217 = vmatprep.subr.mxu0 0.0
  %218 = vmatpush1.msra.mxu0 0.0
  %219 = vmatprep.subr.mxu0 0.0
  %220 = vmatpush1.msra.mxu0 0.0
  %221 = vmatprep.subr.mxu0 0.0
  %222 = vmatpush1.msra.mxu0 0.0
  %223 = vmatprep.subr.mxu0 0.0
  %224 = vmatpush1.msra.mxu0 0.0
  %225 = vmatprep.subr.mxu0 0.0
  %226 = vmatpush1.msra.mxu0 0.0
  %227 = vmatprep.subr.mxu0 0.0
  %228 = vmatpush1.msra.mxu0 0.0
  %229 = vmatprep.subr.mxu0 0.0
  %230 = vmatpush1.msra.mxu0 0.0
  %231 = vmatprep.subr.mxu0 0.0
  %232 = vmatpush1.msra.mxu0 0.0
  %233 = vmatprep.subr.mxu0 0.0
  %234 = vmatpush1.msra.mxu0 0.0
  %235 = vmatprep.subr.mxu0 0.0
  %236 = vmatpush1.msra.mxu0 0.0
  %237 = vmatprep.subr.mxu0 0.0
  %238 = vmatpush1.msra.mxu0 0.0
  %239 = vmatprep.subr.mxu0 0.0
  %240 = vmatpush1.msra.mxu0 0.0
  %241 = vmatprep.subr.mxu0 0.0
  %242 = vmatpush1.msra.mxu0 0.0
  %243 = vmatprep.subr.mxu0 0.0
  %244 = vmatpush1.msra.mxu0 0.0
  %245 = vmatprep.subr.mxu0 0.0
  %246 = vmatpush1.msra.mxu0 0.0
  %247 = vmatprep.subr.mxu0 0.0
  %248 = vmatpush1.msra.mxu0 0.0
  %249 = vmatprep.subr.mxu0 0.0
  %250 = vmatpush1.msra.mxu0 0.0
  %251 = vmatprep.subr.mxu0 0.0
  %252 = vmatpush1.msra.mxu0 0.0
  %253 = vmatprep.subr.mxu0 0.0
  %254 = vmatpush1.msra.mxu0 0.0
  %255 = vmatprep.subr.mxu0 0.0
  %256 = vmatpush1.msra.mxu0 0.0
  %257 = vmatprep.subr.mxu0 0.0
  %258 = vmatpush1.msra.mxu0 0.0
  %259 = vmatprep.mubr.f32.mxu0 0.0
  %260 = vmatmul.mubr.f32.gmra.mrb[0].mxu0 %v193
  %v261 = vpop.f32.mrb[0].mxu0
  %v262 = vadd.f32 0.0, %v261
  %v263 = vpop.f32.mrb[0].mxu0
  %264 = vdwg.mxu0
  %v265 = vadd.f32 %v190, %v262
  %v266 = vxor.u32 %v265, 2147483648
  %v267 = vmul.f32 %v266, 1.442695
  %v268 = vpow.pop %v267
  %v269 = vadd.f32 %v268, 1.0
  %v270 = vrcp.pop %v269
  %v271 = vmul.f32 1.0, %v270
  %v272 = vtanh.pop %v265
  %v273 = vmul.f32 %v271, 0.0
  %275 = vrot.lane.b32.xlu0 %v272, 64
  %v276 = vpop.permute.xlu0 %275
  %v278 = vmul.f32 %v271, %v276
  %280 = vrot.lane.b32.xlu0 %v278, 32
  %v281 = vpop.permute.xlu0 %280
  %v283 = vadd.f32 %v273, %v281
  %v284 = vtanh.pop %v283
  %286 = vrot.lane.b32.xlu0 %v284, 64
  %v287 = vpop.permute.xlu0 %286
  %v289 = vmul.f32 %v271, %v287
  %291 = vrot.lane.b32.xlu0 %v289, 32
  %v292 = vpop.permute.xlu0 %291
  %294 = vst.msk [vmem:[#allocation2] sm:$0xff] %vm191, %v292
  %s295 = scalar_lea.vmem [#allocation3], 8
  %v296 = vld [vmem:[%s295] sm:$0xff]
  %v297 = vsel %vm191, %v292, 0
  %299 = vmatprep.subr.mxu0 0.0
  %300 = vmatpush1.msra.mxu0 %v33
  %301 = vmatprep.subr.mxu0 0.0
  %302 = vmatpush1.msra.mxu0 %v34
  %303 = vmatprep.subr.mxu0 0.0
  %304 = vmatpush1.msra.mxu0 %v35
  %305 = vmatprep.subr.mxu0 0.0
  %306 = vmatpush1.msra.mxu0 %v36
  %307 = vmatprep.subr.mxu0 0.0
  %308 = vmatpush1.msra.mxu0 0.0
  %309 = vmatprep.subr.mxu0 0.0
  %310 = vmatpush1.msra.mxu0 0.0
  %311 = vmatprep.subr.mxu0 0.0
  %312 = vmatpush1.msra.mxu0 0.0
  %313 = vmatprep.subr.mxu0 0.0
  %314 = vmatpush1.msra.mxu0 0.0
  %315 = vmatprep.subr.mxu0 0.0
  %316 = vmatpush1.msra.mxu0 0.0
  %317 = vmatprep.subr.mxu0 0.0
  %318 = vmatpush1.msra.mxu0 0.0
  %319 = vmatprep.subr.mxu0 0.0
  %320 = vmatpush1.msra.mxu0 0.0
  %321 = vmatprep.subr.mxu0 0.0
  %322 = vmatpush1.msra.mxu0 0.0
  %323 = vmatprep.subr.mxu0 0.0
  %324 = vmatpush1.msra.mxu0 0.0
  %325 = vmatprep.subr.mxu0 0.0
  %326 = vmatpush1.msra.mxu0 0.0
  %327 = vmatprep.subr.mxu0 0.0
  %328 = vmatpush1.msra.mxu0 0.0
  %329 = vmatprep.subr.mxu0 0.0
  %330 = vmatpush1.msra.mxu0 0.0
  %331 = vmatprep.subr.mxu0 0.0
  %332 = vmatpush1.msra.mxu0 0.0
  %333 = vmatprep.subr.mxu0 0.0
  %334 = vmatpush1.msra.mxu0 0.0
  %335 = vmatprep.subr.mxu0 0.0
  %336 = vmatpush1.msra.mxu0 0.0
  %337 = vmatprep.subr.mxu0 0.0
  %338 = vmatpush1.msra.mxu0 0.0
  %339 = vmatprep.subr.mxu0 0.0
  %340 = vmatpush1.msra.mxu0 0.0
  %341 = vmatprep.subr.mxu0 0.0
  %342 = vmatpush1.msra.mxu0 0.0
  %343 = vmatprep.subr.mxu0 0.0
  %344 = vmatpush1.msra.mxu0 0.0
  %345 = vmatprep.subr.mxu0 0.0
  %346 = vmatpush1.msra.mxu0 0.0
  %347 = vmatprep.subr.mxu0 0.0
  %348 = vmatpush1.msra.mxu0 0.0
  %349 = vmatprep.subr.mxu0 0.0
  %350 = vmatpush1.msra.mxu0 0.0
  %351 = vmatprep.subr.mxu0 0.0
  %352 = vmatpush1.msra.mxu0 0.0
  %353 = vmatprep.subr.mxu0 0.0
  %354 = vmatpush1.msra.mxu0 0.0
  %355 = vmatprep.subr.mxu0 0.0
  %356 = vmatpush1.msra.mxu0 0.0
  %357 = vmatprep.subr.mxu0 0.0
  %358 = vmatpush1.msra.mxu0 0.0
  %359 = vmatprep.subr.mxu0 0.0
  %360 = vmatpush1.msra.mxu0 0.0
  %361 = vmatprep.subr.mxu0 0.0
  %362 = vmatpush1.msra.mxu0 0.0
  %363 = vmatprep.mubr.f32.mxu0 0.0
  %364 = vmatmul.mubr.f32.gmra.mrb[0].mxu0 %v297
  %v365 = vpop.f32.mrb[0].mxu0
  %v366 = vadd.f32 0.0, %v365
  %v367 = vpop.f32.mrb[0].mxu0
  %368 = vdwg.mxu0
  %v369 = vadd.f32 %v296, %v366
  %v370 = vxor.u32 %v369, 2147483648
  %v371 = vmul.f32 %v370, 1.442695
  %v372 = vpow.pop %v371
  %v373 = vadd.f32 %v372, 1.0
  %v374 = vrcp.pop %v373
  %v375 = vmul.f32 1.0, %v374
  %v376 = vtanh.pop %v369
  %v377 = vmul.f32 %v375, %v283
  %379 = vrot.lane.b32.xlu0 %v376, 64
  %v380 = vpop.permute.xlu0 %379
  %v382 = vmul.f32 %v375, %v380
  %384 = vrot.lane.b32.xlu0 %v382, 32
  %v385 = vpop.permute.xlu0 %384
  %v387 = vadd.f32 %v377, %v385
  %v388 = vtanh.pop %v387
  %390 = vrot.lane.b32.xlu0 %v388, 64
  %v391 = vpop.permute.xlu0 %390
  %v393 = vmul.f32 %v375, %v391
  %395 = vrot.lane.b32.xlu0 %v393, 32
  %v396 = vpop.permute.xlu0 %395
  %s398 = scalar_lea.vmem [#allocation2], 8
  %399 = vst.msk [vmem:[%s398] sm:$0xff] %vm191, %v396
  %s400 = scalar_lea.vmem [#allocation3], 16
  %v401 = vld [vmem:[%s400] sm:$0xff]
  %v402 = vsel %vm191, %v396, 0
  %404 = vmatprep.subr.mxu0 0.0
  %405 = vmatpush1.msra.mxu0 %v33
  %406 = vmatprep.subr.mxu0 0.0
  %407 = vmatpush1.msra.mxu0 %v34
  %408 = vmatprep.subr.mxu0 0.0
  %409 = vmatpush1.msra.mxu0 %v35
  %410 = vmatprep.subr.mxu0 0.0
  %411 = vmatpush1.msra.mxu0 %v36
  %412 = vmatprep.subr.mxu0 0.0
  %413 = vmatpush1.msra.mxu0 0.0
  %414 = vmatprep.subr.mxu0 0.0
  %415 = vmatpush1.msra.mxu0 0.0
  %416 = vmatprep.subr.mxu0 0.0
  %417 = vmatpush1.msra.mxu0 0.0
  %418 = vmatprep.subr.mxu0 0.0
  %419 = vmatpush1.msra.mxu0 0.0
  %420 = vmatprep.subr.mxu0 0.0
  %421 = vmatpush1.msra.mxu0 0.0
  %422 = vmatprep.subr.mxu0 0.0
  %423 = vmatpush1.msra.mxu0 0.0
  %424 = vmatprep.subr.mxu0 0.0
  %425 = vmatpush1.msra.mxu0 0.0
  %426 = vmatprep.subr.mxu0 0.0
  %427 = vmatpush1.msra.mxu0 0.0
  %428 = vmatprep.subr.mxu0 0.0
  %429 = vmatpush1.msra.mxu0 0.0
  %430 = vmatprep.subr.mxu0 0.0
  %431 = vmatpush1.msra.mxu0 0.0
  %432 = vmatprep.subr.mxu0 0.0
  %433 = vmatpush1.msra.mxu0 0.0
  %434 = vmatprep.subr.mxu0 0.0
  %435 = vmatpush1.msra.mxu0 0.0
  %436 = vmatprep.subr.mxu0 0.0
  %437 = vmatpush1.msra.mxu0 0.0
  %438 = vmatprep.subr.mxu0 0.0
  %439 = vmatpush1.msra.mxu0 0.0
  %440 = vmatprep.subr.mxu0 0.0
  %441 = vmatpush1.msra.mxu0 0.0
  %442 = vmatprep.subr.mxu0 0.0
  %443 = vmatpush1.msra.mxu0 0.0
  %444 = vmatprep.subr.mxu0 0.0
  %445 = vmatpush1.msra.mxu0 0.0
  %446 = vmatprep.subr.mxu0 0.0
  %447 = vmatpush1.msra.mxu0 0.0
  %448 = vmatprep.subr.mxu0 0.0
  %449 = vmatpush1.msra.mxu0 0.0
  %450 = vmatprep.subr.mxu0 0.0
  %451 = vmatpush1.msra.mxu0 0.0
  %452 = vmatprep.subr.mxu0 0.0
  %453 = vmatpush1.msra.mxu0 0.0
  %454 = vmatprep.subr.mxu0 0.0
  %455 = vmatpush1.msra.mxu0 0.0
  %456 = vmatprep.subr.mxu0 0.0
  %457 = vmatpush1.msra.mxu0 0.0
  %458 = vmatprep.subr.mxu0 0.0
  %459 = vmatpush1.msra.mxu0 0.0
  %460 = vmatprep.subr.mxu0 0.0
  %461 = vmatpush1.msra.mxu0 0.0
  %462 = vmatprep.subr.mxu0 0.0
  %463 = vmatpush1.msra.mxu0 0.0
  %464 = vmatprep.subr.mxu0 0.0
  %465 = vmatpush1.msra.mxu0 0.0
  %466 = vmatprep.subr.mxu0 0.0
  %467 = vmatpush1.msra.mxu0 0.0
  %468 = vmatprep.mubr.f32.mxu0 0.0
  %469 = vmatmul.mubr.f32.gmra.mrb[0].mxu0 %v402
  %v470 = vpop.f32.mrb[0].mxu0
  %v471 = vadd.f32 0.0, %v470
  %v472 = vpop.f32.mrb[0].mxu0
  %473 = vdwg.mxu0
  %v474 = vadd.f32 %v401, %v471
  %v475 = vxor.u32 %v474, 2147483648
  %v476 = vmul.f32 %v475, 1.442695
  %v477 = vpow.pop %v476
  %v478 = vadd.f32 %v477, 1.0
  %v479 = vrcp.pop %v478
  %v480 = vmul.f32 1.0, %v479
  %v481 = vtanh.pop %v474
  %v482 = vmul.f32 %v480, %v387
  %484 = vrot.lane.b32.xlu0 %v481, 64
  %v485 = vpop.permute.xlu0 %484
  %v487 = vmul.f32 %v480, %v485
  %489 = vrot.lane.b32.xlu0 %v487, 32
  %v490 = vpop.permute.xlu0 %489
  %v492 = vadd.f32 %v482, %v490
  %v493 = vtanh.pop %v492
  %495 = vrot.lane.b32.xlu0 %v493, 64
  %v496 = vpop.permute.xlu0 %495
  %v498 = vmul.f32 %v480, %v496
  %500 = vrot.lane.b32.xlu0 %v498, 32
  %v501 = vpop.permute.xlu0 %500
  %s503 = scalar_lea.vmem [#allocation2], 16
  %504 = vst.msk [vmem:[%s503] sm:$0xff] %vm191, %v501
  %s505 = scalar_lea.vmem [#allocation3], 24
  %v506 = vld [vmem:[%s505] sm:$0xff]
  %v507 = vsel %vm191, %v501, 0
  %509 = vmatprep.subr.mxu0 0.0
  %510 = vmatpush1.msra.mxu0 %v33
  %511 = vmatprep.subr.mxu0 0.0
  %512 = vmatpush1.msra.mxu0 %v34
  %513 = vmatprep.subr.mxu0 0.0
  %514 = vmatpush1.msra.mxu0 %v35
  %515 = vmatprep.subr.mxu0 0.0
  %516 = vmatpush1.msra.mxu0 %v36
  %517 = vmatprep.subr.mxu0 0.0
  %518 = vmatpush1.msra.mxu0 0.0
  %519 = vmatprep.subr.mxu0 0.0
  %520 = vmatpush1.msra.mxu0 0.0
  %521 = vmatprep.subr.mxu0 0.0
  %522 = vmatpush1.msra.mxu0 0.0
  %523 = vmatprep.subr.mxu0 0.0
  %524 = vmatpush1.msra.mxu0 0.0
  %525 = vmatprep.subr.mxu0 0.0
  %526 = vmatpush1.msra.mxu0 0.0
  %527 = vmatprep.subr.mxu0 0.0
  %528 = vmatpush1.msra.mxu0 0.0
  %529 = vmatprep.subr.mxu0 0.0
  %530 = vmatpush1.msra.mxu0 0.0
  %531 = vmatprep.subr.mxu0 0.0
  %532 = vmatpush1.msra.mxu0 0.0
  %533 = vmatprep.subr.mxu0 0.0
  %534 = vmatpush1.msra.mxu0 0.0
  %535 = vmatprep.subr.mxu0 0.0
  %536 = vmatpush1.msra.mxu0 0.0
  %537 = vmatprep.subr.mxu0 0.0
  %538 = vmatpush1.msra.mxu0 0.0
  %539 = vmatprep.subr.mxu0 0.0
  %540 = vmatpush1.msra.mxu0 0.0
  %541 = vmatprep.subr.mxu0 0.0
  %542 = vmatpush1.msra.mxu0 0.0
  %543 = vmatprep.subr.mxu0 0.0
  %544 = vmatpush1.msra.mxu0 0.0
  %545 = vmatprep.subr.mxu0 0.0
  %546 = vmatpush1.msra.mxu0 0.0
  %547 = vmatprep.subr.mxu0 0.0
  %548 = vmatpush1.msra.mxu0 0.0
  %549 = vmatprep.subr.mxu0 0.0
  %550 = vmatpush1.msra.mxu0 0.0
  %551 = vmatprep.subr.mxu0 0.0
  %552 = vmatpush1.msra.mxu0 0.0
  %553 = vmatprep.subr.mxu0 0.0
  %554 = vmatpush1.msra.mxu0 0.0
  %555 = vmatprep.subr.mxu0 0.0
  %556 = vmatpush1.msra.mxu0 0.0
  %557 = vmatprep.subr.mxu0 0.0
  %558 = vmatpush1.msra.mxu0 0.0
  %559 = vmatprep.subr.mxu0 0.0
  %560 = vmatpush1.msra.mxu0 0.0
  %561 = vmatprep.subr.mxu0 0.0
  %562 = vmatpush1.msra.mxu0 0.0
  %563 = vmatprep.subr.mxu0 0.0
  %564 = vmatpush1.msra.mxu0 0.0
  %565 = vmatprep.subr.mxu0 0.0
  %566 = vmatpush1.msra.mxu0 0.0
  %567 = vmatprep.subr.mxu0 0.0
  %568 = vmatpush1.msra.mxu0 0.0
  %569 = vmatprep.subr.mxu0 0.0
  %570 = vmatpush1.msra.mxu0 0.0
  %571 = vmatprep.subr.mxu0 0.0
  %572 = vmatpush1.msra.mxu0 0.0
  %573 = vmatprep.mubr.f32.mxu0 0.0
  %574 = vmatmul.mubr.f32.gmra.mrb[0].mxu0 %v507
  %v575 = vpop.f32.mrb[0].mxu0
  %v576 = vadd.f32 0.0, %v575
  %v577 = vpop.f32.mrb[0].mxu0
  %578 = vdwg.mxu0
  %v579 = vadd.f32 %v506, %v576
  %v580 = vxor.u32 %v579, 2147483648
  %v581 = vmul.f32 %v580, 1.442695
  %v582 = vpow.pop %v581
  %v583 = vadd.f32 %v582, 1.0
  %v584 = vrcp.pop %v583
  %v585 = vmul.f32 1.0, %v584
  %v586 = vtanh.pop %v579
  %v587 = vmul.f32 %v585, %v492
  %589 = vrot.lane.b32.xlu0 %v586, 64
  %v590 = vpop.permute.xlu0 %589
  %v592 = vmul.f32 %v585, %v590
  %594 = vrot.lane.b32.xlu0 %v592, 32
  %v595 = vpop.permute.xlu0 %594
  %v597 = vadd.f32 %v587, %v595
  %v598 = vtanh.pop %v597
  %600 = vrot.lane.b32.xlu0 %v598, 64
  %v601 = vpop.permute.xlu0 %600
  %v603 = vmul.f32 %v585, %v601
  %605 = vrot.lane.b32.xlu0 %v603, 32
  %v606 = vpop.permute.xlu0 %605
  %s608 = scalar_lea.vmem [#allocation2], 24
  %609 = vst.msk [vmem:[%s608] sm:$0xff] %vm191, %v606
  %s610 = scalar_lea.vmem [#allocation3], 32
  %v611 = vld [vmem:[%s610] sm:$0xff]
  %v612 = vsel %vm191, %v606, 0
  %614 = vmatprep.subr.mxu0 0.0
  %615 = vmatpush1.msra.mxu0 %v33
  %616 = vmatprep.subr.mxu0 0.0
  %617 = vmatpush1.msra.mxu0 %v34
  %618 = vmatprep.subr.mxu0 0.0
  %619 = vmatpush1.msra.mxu0 %v35
  %620 = vmatprep.subr.mxu0 0.0
  %621 = vmatpush1.msra.mxu0 %v36
  %622 = vmatprep.subr.mxu0 0.0
  %623 = vmatpush1.msra.mxu0 0.0
  %624 = vmatprep.subr.mxu0 0.0
  %625 = vmatpush1.msra.mxu0 0.0
  %626 = vmatprep.subr.mxu0 0.0
  %627 = vmatpush1.msra.mxu0 0.0
  %628 = vmatprep.subr.mxu0 0.0
  %629 = vmatpush1.msra.mxu0 0.0
  %630 = vmatprep.subr.mxu0 0.0
  %631 = vmatpush1.msra.mxu0 0.0
  %632 = vmatprep.subr.mxu0 0.0
  %633 = vmatpush1.msra.mxu0 0.0
  %634 = vmatprep.subr.mxu0 0.0
  %635 = vmatpush1.msra.mxu0 0.0
  %636 = vmatprep.subr.mxu0 0.0
  %637 = vmatpush1.msra.mxu0 0.0
  %638 = vmatprep.subr.mxu0 0.0
  %639 = vmatpush1.msra.mxu0 0.0
  %640 = vmatprep.subr.mxu0 0.0
  %641 = vmatpush1.msra.mxu0 0.0
  %642 = vmatprep.subr.mxu0 0.0
  %643 = vmatpush1.msra.mxu0 0.0
  %644 = vmatprep.subr.mxu0 0.0
  %645 = vmatpush1.msra.mxu0 0.0
  %646 = vmatprep.subr.mxu0 0.0
  %647 = vmatpush1.msra.mxu0 0.0
  %648 = vmatprep.subr.mxu0 0.0
  %649 = vmatpush1.msra.mxu0 0.0
  %650 = vmatprep.subr.mxu0 0.0
  %651 = vmatpush1.msra.mxu0 0.0
  %652 = vmatprep.subr.mxu0 0.0
  %653 = vmatpush1.msra.mxu0 0.0
  %654 = vmatprep.subr.mxu0 0.0
  %655 = vmatpush1.msra.mxu0 0.0
  %656 = vmatprep.subr.mxu0 0.0
  %657 = vmatpush1.msra.mxu0 0.0
  %658 = vmatprep.subr.mxu0 0.0
  %659 = vmatpush1.msra.mxu0 0.0
  %660 = vmatprep.subr.mxu0 0.0
  %661 = vmatpush1.msra.mxu0 0.0
  %662 = vmatprep.subr.mxu0 0.0
  %663 = vmatpush1.msra.mxu0 0.0
  %664 = vmatprep.subr.mxu0 0.0
  %665 = vmatpush1.msra.mxu0 0.0
  %666 = vmatprep.subr.mxu0 0.0
  %667 = vmatpush1.msra.mxu0 0.0
  %668 = vmatprep.subr.mxu0 0.0
  %669 = vmatpush1.msra.mxu0 0.0
  %670 = vmatprep.subr.mxu0 0.0
  %671 = vmatpush1.msra.mxu0 0.0
  %672 = vmatprep.subr.mxu0 0.0
  %673 = vmatpush1.msra.mxu0 0.0
  %674 = vmatprep.subr.mxu0 0.0
  %675 = vmatpush1.msra.mxu0 0.0
  %676 = vmatprep.subr.mxu0 0.0
  %677 = vmatpush1.msra.mxu0 0.0
  %678 = vmatprep.mubr.f32.mxu0 0.0
  %679 = vmatmul.mubr.f32.gmra.mrb[0].mxu0 %v612
  %v680 = vpop.f32.mrb[0].mxu0
  %v681 = vadd.f32 0.0, %v680
  %v682 = vpop.f32.mrb[0].mxu0
  %683 = vdwg.mxu0
  %v684 = vadd.f32 %v611, %v681
  %v685 = vxor.u32 %v684, 2147483648
  %v686 = vmul.f32 %v685, 1.442695
  %v687 = vpow.pop %v686
  %v688 = vadd.f32 %v687, 1.0
  %v689 = vrcp.pop %v688
  %v690 = vmul.f32 1.0, %v689
  %v691 = vtanh.pop %v684
  %v692 = vmul.f32 %v690, %v597
  %694 = vrot.lane.b32.xlu0 %v691, 64
  %v695 = vpop.permute.xlu0 %694
  %v697 = vmul.f32 %v690, %v695
  %699 = vrot.lane.b32.xlu0 %v697, 32
  %v700 = vpop.permute.xlu0 %699
  %v702 = vadd.f32 %v692, %v700
  %v703 = vtanh.pop %v702
  %705 = vrot.lane.b32.xlu0 %v703, 64
  %v706 = vpop.permute.xlu0 %705
  %v708 = vmul.f32 %v690, %v706
  %710 = vrot.lane.b32.xlu0 %v708, 32
  %v711 = vpop.permute.xlu0 %710
  %s713 = scalar_lea.vmem [#allocation2], 32
  %714 = vst.msk [vmem:[%s713] sm:$0xff] %vm191, %v711
  %s715 = scalar_lea.vmem [#allocation3], 40
  %v716 = vld [vmem:[%s715] sm:$0xff]
  %v717 = vsel %vm191, %v711, 0
  %719 = vmatprep.subr.mxu0 0.0
  %720 = vmatpush1.msra.mxu0 %v33
  %721 = vmatprep.subr.mxu0 0.0
  %722 = vmatpush1.msra.mxu0 %v34
  %723 = vmatprep.subr.mxu0 0.0
  %724 = vmatpush1.msra.mxu0 %v35
  %725 = vmatprep.subr.mxu0 0.0
  %726 = vmatpush1.msra.mxu0 %v36
  %727 = vmatprep.subr.mxu0 0.0
  %728 = vmatpush1.msra.mxu0 0.0
  %729 = vmatprep.subr.mxu0 0.0
  %730 = vmatpush1.msra.mxu0 0.0
  %731 = vmatprep.subr.mxu0 0.0
  %732 = vmatpush1.msra.mxu0 0.0
  %733 = vmatprep.subr.mxu0 0.0
  %734 = vmatpush1.msra.mxu0 0.0
  %735 = vmatprep.subr.mxu0 0.0
  %736 = vmatpush1.msra.mxu0 0.0
  %737 = vmatprep.subr.mxu0 0.0
  %738 = vmatpush1.msra.mxu0 0.0
  %739 = vmatprep.subr.mxu0 0.0
  %740 = vmatpush1.msra.mxu0 0.0
  %741 = vmatprep.subr.mxu0 0.0
  %742 = vmatpush1.msra.mxu0 0.0
  %743 = vmatprep.subr.mxu0 0.0
  %744 = vmatpush1.msra.mxu0 0.0
  %745 = vmatprep.subr.mxu0 0.0
  %746 = vmatpush1.msra.mxu0 0.0
  %747 = vmatprep.subr.mxu0 0.0
  %748 = vmatpush1.msra.mxu0 0.0
  %749 = vmatprep.subr.mxu0 0.0
  %750 = vmatpush1.msra.mxu0 0.0
  %751 = vmatprep.subr.mxu0 0.0
  %752 = vmatpush1.msra.mxu0 0.0
  %753 = vmatprep.subr.mxu0 0.0
  %754 = vmatpush1.msra.mxu0 0.0
  %755 = vmatprep.subr.mxu0 0.0
  %756 = vmatpush1.msra.mxu0 0.0
  %757 = vmatprep.subr.mxu0 0.0
  %758 = vmatpush1.msra.mxu0 0.0
  %759 = vmatprep.subr.mxu0 0.0
  %760 = vmatpush1.msra.mxu0 0.0
  %761 = vmatprep.subr.mxu0 0.0
  %762 = vmatpush1.msra.mxu0 0.0
  %763 = vmatprep.subr.mxu0 0.0
  %764 = vmatpush1.msra.mxu0 0.0
  %765 = vmatprep.subr.mxu0 0.0
  %766 = vmatpush1.msra.mxu0 0.0
  %767 = vmatprep.subr.mxu0 0.0
  %768 = vmatpush1.msra.mxu0 0.0
  %769 = vmatprep.subr.mxu0 0.0
  %770 = vmatpush1.msra.mxu0 0.0
  %771 = vmatprep.subr.mxu0 0.0
  %772 = vmatpush1.msra.mxu0 0.0
  %773 = vmatprep.subr.mxu0 0.0
  %774 = vmatpush1.msra.mxu0 0.0
  %775 = vmatprep.subr.mxu0 0.0
  %776 = vmatpush1.msra.mxu0 0.0
  %777 = vmatprep.subr.mxu0 0.0
  %778 = vmatpush1.msra.mxu0 0.0
  %779 = vmatprep.subr.mxu0 0.0
  %780 = vmatpush1.msra.mxu0 0.0
  %781 = vmatprep.subr.mxu0 0.0
  %782 = vmatpush1.msra.mxu0 0.0
  %783 = vmatprep.mubr.f32.mxu0 0.0
  %784 = vmatmul.mubr.f32.gmra.mrb[0].mxu0 %v717
  %v785 = vpop.f32.mrb[0].mxu0
  %v786 = vadd.f32 0.0, %v785
  %v787 = vpop.f32.mrb[0].mxu0
  %788 = vdwg.mxu0
  %v789 = vadd.f32 %v716, %v786
  %v790 = vxor.u32 %v789, 2147483648
  %v791 = vmul.f32 %v790, 1.442695
  %v792 = vpow.pop %v791
  %v793 = vadd.f32 %v792, 1.0
  %v794 = vrcp.pop %v793
  %v795 = vmul.f32 1.0, %v794
  %v796 = vtanh.pop %v789
  %v797 = vmul.f32 %v795, %v702
  %799 = vrot.lane.b32.xlu0 %v796, 64
  %v800 = vpop.permute.xlu0 %799
  %v802 = vmul.f32 %v795, %v800
  %804 = vrot.lane.b32.xlu0 %v802, 32
  %v805 = vpop.permute.xlu0 %804
  %v807 = vadd.f32 %v797, %v805
  %v808 = vtanh.pop %v807
  %810 = vrot.lane.b32.xlu0 %v808, 64
  %v811 = vpop.permute.xlu0 %810
  %v813 = vmul.f32 %v795, %v811
  %815 = vrot.lane.b32.xlu0 %v813, 32
  %v816 = vpop.permute.xlu0 %815
  %s818 = scalar_lea.vmem [#allocation2], 40
  %819 = vst.msk [vmem:[%s818] sm:$0xff] %vm191, %v816
  %s820 = scalar_lea.vmem [#allocation3], 48
  %v821 = vld [vmem:[%s820] sm:$0xff]
  %v822 = vsel %vm191, %v816, 0
  %824 = vmatprep.subr.mxu0 0.0
  %825 = vmatpush1.msra.mxu0 %v33
  %826 = vmatprep.subr.mxu0 0.0
  %827 = vmatpush1.msra.mxu0 %v34
  %828 = vmatprep.subr.mxu0 0.0
  %829 = vmatpush1.msra.mxu0 %v35
  %830 = vmatprep.subr.mxu0 0.0
  %831 = vmatpush1.msra.mxu0 %v36
  %832 = vmatprep.subr.mxu0 0.0
  %833 = vmatpush1.msra.mxu0 0.0
  %834 = vmatprep.subr.mxu0 0.0
  %835 = vmatpush1.msra.mxu0 0.0
  %836 = vmatprep.subr.mxu0 0.0
  %837 = vmatpush1.msra.mxu0 0.0
  %838 = vmatprep.subr.mxu0 0.0
  %839 = vmatpush1.msra.mxu0 0.0
  %840 = vmatprep.subr.mxu0 0.0
  %841 = vmatpush1.msra.mxu0 0.0
  %842 = vmatprep.subr.mxu0 0.0
  %843 = vmatpush1.msra.mxu0 0.0
  %844 = vmatprep.subr.mxu0 0.0
  %845 = vmatpush1.msra.mxu0 0.0
  %846 = vmatprep.subr.mxu0 0.0
  %847 = vmatpush1.msra.mxu0 0.0
  %848 = vmatprep.subr.mxu0 0.0
  %849 = vmatpush1.msra.mxu0 0.0
  %850 = vmatprep.subr.mxu0 0.0
  %851 = vmatpush1.msra.mxu0 0.0
  %852 = vmatprep.subr.mxu0 0.0
  %853 = vmatpush1.msra.mxu0 0.0
  %854 = vmatprep.subr.mxu0 0.0
  %855 = vmatpush1.msra.mxu0 0.0
  %856 = vmatprep.subr.mxu0 0.0
  %857 = vmatpush1.msra.mxu0 0.0
  %858 = vmatprep.subr.mxu0 0.0
  %859 = vmatpush1.msra.mxu0 0.0
  %860 = vmatprep.subr.mxu0 0.0
  %861 = vmatpush1.msra.mxu0 0.0
  %862 = vmatprep.subr.mxu0 0.0
  %863 = vmatpush1.msra.mxu0 0.0
  %864 = vmatprep.subr.mxu0 0.0
  %865 = vmatpush1.msra.mxu0 0.0
  %866 = vmatprep.subr.mxu0 0.0
  %867 = vmatpush1.msra.mxu0 0.0
  %868 = vmatprep.subr.mxu0 0.0
  %869 = vmatpush1.msra.mxu0 0.0
  %870 = vmatprep.subr.mxu0 0.0
  %871 = vmatpush1.msra.mxu0 0.0
  %872 = vmatprep.subr.mxu0 0.0
  %873 = vmatpush1.msra.mxu0 0.0
  %874 = vmatprep.subr.mxu0 0.0
  %875 = vmatpush1.msra.mxu0 0.0
  %876 = vmatprep.subr.mxu0 0.0
  %877 = vmatpush1.msra.mxu0 0.0
  %878 = vmatprep.subr.mxu0 0.0
  %879 = vmatpush1.msra.mxu0 0.0
  %880 = vmatprep.subr.mxu0 0.0
  %881 = vmatpush1.msra.mxu0 0.0
  %882 = vmatprep.subr.mxu0 0.0
  %883 = vmatpush1.msra.mxu0 0.0
  %884 = vmatprep.subr.mxu0 0.0
  %885 = vmatpush1.msra.mxu0 0.0
  %886 = vmatprep.subr.mxu0 0.0
  %887 = vmatpush1.msra.mxu0 0.0
  %888 = vmatprep.mubr.f32.mxu0 0.0
  %889 = vmatmul.mubr.f32.gmra.mrb[0].mxu0 %v822
  %v890 = vpop.f32.mrb[0].mxu0
  %v891 = vadd.f32 0.0, %v890
  %v892 = vpop.f32.mrb[0].mxu0
  %893 = vdwg.mxu0
  %v894 = vadd.f32 %v821, %v891
  %v895 = vxor.u32 %v894, 2147483648
  %v896 = vmul.f32 %v895, 1.442695
  %v897 = vpow.pop %v896
  %v898 = vadd.f32 %v897, 1.0
  %v899 = vrcp.pop %v898
  %v900 = vmul.f32 1.0, %v899
  %v901 = vtanh.pop %v894
  %v902 = vmul.f32 %v900, %v807
  %904 = vrot.lane.b32.xlu0 %v901, 64
  %v905 = vpop.permute.xlu0 %904
  %v907 = vmul.f32 %v900, %v905
  %909 = vrot.lane.b32.xlu0 %v907, 32
  %v910 = vpop.permute.xlu0 %909
  %v912 = vadd.f32 %v902, %v910
  %v913 = vtanh.pop %v912
  %915 = vrot.lane.b32.xlu0 %v913, 64
  %v916 = vpop.permute.xlu0 %915
  %v918 = vmul.f32 %v900, %v916
  %920 = vrot.lane.b32.xlu0 %v918, 32
  %v921 = vpop.permute.xlu0 %920
  %s923 = scalar_lea.vmem [#allocation2], 48
  %924 = vst.msk [vmem:[%s923] sm:$0xff] %vm191, %v921
  %s925 = scalar_lea.vmem [#allocation3], 56
  %v926 = vld [vmem:[%s925] sm:$0xff]
  %v927 = vsel %vm191, %v921, 0
  %929 = vmatprep.subr.mxu0 0.0
  %930 = vmatpush1.msra.mxu0 %v33
  %931 = vmatprep.subr.mxu0 0.0
  %932 = vmatpush1.msra.mxu0 %v34
  %933 = vmatprep.subr.mxu0 0.0
  %934 = vmatpush1.msra.mxu0 %v35
  %935 = vmatprep.subr.mxu0 0.0
  %936 = vmatpush1.msra.mxu0 %v36
  %937 = vmatprep.subr.mxu0 0.0
  %938 = vmatpush1.msra.mxu0 0.0
  %939 = vmatprep.subr.mxu0 0.0
  %940 = vmatpush1.msra.mxu0 0.0
  %941 = vmatprep.subr.mxu0 0.0
  %942 = vmatpush1.msra.mxu0 0.0
  %943 = vmatprep.subr.mxu0 0.0
  %944 = vmatpush1.msra.mxu0 0.0
  %945 = vmatprep.subr.mxu0 0.0
  %946 = vmatpush1.msra.mxu0 0.0
  %947 = vmatprep.subr.mxu0 0.0
  %948 = vmatpush1.msra.mxu0 0.0
  %949 = vmatprep.subr.mxu0 0.0
  %950 = vmatpush1.msra.mxu0 0.0
  %951 = vmatprep.subr.mxu0 0.0
  %952 = vmatpush1.msra.mxu0 0.0
  %953 = vmatprep.subr.mxu0 0.0
  %954 = vmatpush1.msra.mxu0 0.0
  %955 = vmatprep.subr.mxu0 0.0
  %956 = vmatpush1.msra.mxu0 0.0
  %957 = vmatprep.subr.mxu0 0.0
  %958 = vmatpush1.msra.mxu0 0.0
  %959 = vmatprep.subr.mxu0 0.0
  %960 = vmatpush1.msra.mxu0 0.0
  %961 = vmatprep.subr.mxu0 0.0
  %962 = vmatpush1.msra.mxu0 0.0
  %963 = vmatprep.subr.mxu0 0.0
  %964 = vmatpush1.msra.mxu0 0.0
  %965 = vmatprep.subr.mxu0 0.0
  %966 = vmatpush1.msra.mxu0 0.0
  %967 = vmatprep.subr.mxu0 0.0
  %968 = vmatpush1.msra.mxu0 0.0
  %969 = vmatprep.subr.mxu0 0.0
  %970 = vmatpush1.msra.mxu0 0.0
  %971 = vmatprep.subr.mxu0 0.0
  %972 = vmatpush1.msra.mxu0 0.0
  %973 = vmatprep.subr.mxu0 0.0
  %974 = vmatpush1.msra.mxu0 0.0
  %975 = vmatprep.subr.mxu0 0.0
  %976 = vmatpush1.msra.mxu0 0.0
  %977 = vmatprep.subr.mxu0 0.0
  %978 = vmatpush1.msra.mxu0 0.0
  %979 = vmatprep.subr.mxu0 0.0
  %980 = vmatpush1.msra.mxu0 0.0
  %981 = vmatprep.subr.mxu0 0.0
  %982 = vmatpush1.msra.mxu0 0.0
  %983 = vmatprep.subr.mxu0 0.0
  %984 = vmatpush1.msra.mxu0 0.0
  %985 = vmatprep.subr.mxu0 0.0
  %986 = vmatpush1.msra.mxu0 0.0
  %987 = vmatprep.subr.mxu0 0.0
  %988 = vmatpush1.msra.mxu0 0.0
  %989 = vmatprep.subr.mxu0 0.0
  %990 = vmatpush1.msra.mxu0 0.0
  %991 = vmatprep.subr.mxu0 0.0
  %992 = vmatpush1.msra.mxu0 0.0
  %993 = vmatprep.mubr.f32.mxu0 0.0
  %994 = vmatmul.mubr.f32.gmra.mrb[0].mxu0 %v927
  %v995 = vpop.f32.mrb[0].mxu0
  %v996 = vadd.f32 0.0, %v995
  %v997 = vpop.f32.mrb[0].mxu0
  %998 = vdwg.mxu0
  %v999 = vadd.f32 %v926, %v996
  %v1000 = vxor.u32 %v999, 2147483648
  %v1001 = vmul.f32 %v1000, 1.442695
  %v1002 = vpow.pop %v1001
  %v1003 = vadd.f32 %v1002, 1.0
  %v1004 = vrcp.pop %v1003
  %v1005 = vmul.f32 1.0, %v1004
  %v1006 = vtanh.pop %v999
  %v1007 = vmul.f32 %v1005, %v912
  %1009 = vrot.lane.b32.xlu0 %v1006, 64
  %v1010 = vpop.permute.xlu0 %1009
  %v1012 = vmul.f32 %v1005, %v1010
  %1014 = vrot.lane.b32.xlu0 %v1012, 32
  %v1015 = vpop.permute.xlu0 %1014
  %v1017 = vadd.f32 %v1007, %v1015
  %v1018 = vtanh.pop %v1017
  %1020 = vrot.lane.b32.xlu0 %v1018, 64
  %v1021 = vpop.permute.xlu0 %1020
  %v1023 = vmul.f32 %v1005, %v1021
  %1025 = vrot.lane.b32.xlu0 %v1023, 32
  %v1026 = vpop.permute.xlu0 %1025
  %s1028 = scalar_lea.vmem [#allocation2], 56
  %1029 = vst.msk [vmem:[%s1028] sm:$0xff] %vm191, %v1026
  %v1030 = vld [vmem:[%s4] sm:$0xff]
  %v1031 = vld [vmem:[%s4 + $0x8] sm:$0xff]
  %v1032 = vld [vmem:[%s4 + $0x10] sm:$0xff]
  %v1033 = vld [vmem:[%s4 + $0x18] sm:$0xff]
  %v1034 = vld [vmem:[%s5] sm:$0xff]
  %v1035 = vld [vmem:[%s5 + $0x8] sm:$0xff]
  %v1036 = vld [vmem:[%s5 + $0x10] sm:$0xff]
  %v1037 = vld [vmem:[%s5 + $0x18] sm:$0xff]
  %v1038 = vld [vmem:[%s6] sm:$0x1]
  %v1039 = vld [vmem:[#allocation2] sm:$0xff]
  %v1040 = vld [vmem:[#allocation2 + $0x8] sm:$0xff]
  %v1041 = vld [vmem:[#allocation2 + $0x10] sm:$0xff]
  %v1042 = vld [vmem:[#allocation2 + $0x18] sm:$0xff]
  %v1043 = vld [vmem:[#allocation2 + $0x20] sm:$0xff]
  %v1044 = vld [vmem:[#allocation2 + $0x28] sm:$0xff]
  %v1045 = vld [vmem:[#allocation2 + $0x30] sm:$0xff]
  %v1046 = vld [vmem:[#allocation2 + $0x38] sm:$0xff]
  %v1048 = vlaneseq
  %v1049 = vshrl.u32 %v1048, 7
  %v1050 = vsub.s32 0, %v1049
  %v1051 = vrot.slane %v1038, %v1050
  %v1054 = vsel %vm191, %v1039, 0
  %v1057 = vsel %vm191, %v1040, 0
  %v1060 = vsel %vm191, %v1041, 0
  %v1063 = vsel %vm191, %v1042, 0
  %v1066 = vsel %vm191, %v1043, 0
  %v1069 = vsel %vm191, %v1044, 0
  %v1072 = vsel %vm191, %v1045, 0
  %v1075 = vsel %vm191, %v1046, 0
  %1077 = vmatprep.subr.mxu0 0.0
  %1078 = vmatpush1.msra.mxu0 %v1030
  %1079 = vmatprep.subr.mxu0 0.0
  %1080 = vmatpush1.msra.mxu0 %v1031
  %1081 = vmatprep.subr.mxu0 0.0
  %1082 = vmatpush1.msra.mxu0 %v1032
  %1083 = vmatprep.subr.mxu0 0.0
  %1084 = vmatpush1.msra.mxu0 %v1033
  %1085 = vmatprep.subr.mxu0 0.0
  %1086 = vmatpush1.msra.mxu0 0.0
  %1087 = vmatprep.subr.mxu0 0.0
  %1088 = vmatpush1.msra.mxu0 0.0
  %1089 = vmatprep.subr.mxu0 0.0
  %1090 = vmatpush1.msra.mxu0 0.0
  %1091 = vmatprep.subr.mxu0 0.0
  %1092 = vmatpush1.msra.mxu0 0.0
  %1093 = vmatprep.subr.mxu0 0.0
  %1094 = vmatpush1.msra.mxu0 0.0
  %1095 = vmatprep.subr.mxu0 0.0
  %1096 = vmatpush1.msra.mxu0 0.0
  %1097 = vmatprep.subr.mxu0 0.0
  %1098 = vmatpush1.msra.mxu0 0.0
  %1099 = vmatprep.subr.mxu0 0.0
  %1100 = vmatpush1.msra.mxu0 0.0
  %1101 = vmatprep.subr.mxu0 0.0
  %1102 = vmatpush1.msra.mxu0 0.0
  %1103 = vmatprep.subr.mxu0 0.0
  %1104 = vmatpush1.msra.mxu0 0.0
  %1105 = vmatprep.subr.mxu0 0.0
  %1106 = vmatpush1.msra.mxu0 0.0
  %1107 = vmatprep.subr.mxu0 0.0
  %1108 = vmatpush1.msra.mxu0 0.0
  %1109 = vmatprep.subr.mxu0 0.0
  %1110 = vmatpush1.msra.mxu0 0.0
  %1111 = vmatprep.subr.mxu0 0.0
  %1112 = vmatpush1.msra.mxu0 0.0
  %1113 = vmatprep.subr.mxu0 0.0
  %1114 = vmatpush1.msra.mxu0 0.0
  %1115 = vmatprep.subr.mxu0 0.0
  %1116 = vmatpush1.msra.mxu0 0.0
  %1117 = vmatprep.subr.mxu0 0.0
  %1118 = vmatpush1.msra.mxu0 0.0
  %1119 = vmatprep.subr.mxu0 0.0
  %1120 = vmatpush1.msra.mxu0 0.0
  %1121 = vmatprep.subr.mxu0 0.0
  %1122 = vmatpush1.msra.mxu0 0.0
  %1123 = vmatprep.subr.mxu0 0.0
  %1124 = vmatpush1.msra.mxu0 0.0
  %1125 = vmatprep.subr.mxu0 0.0
  %1126 = vmatpush1.msra.mxu0 0.0
  %1127 = vmatprep.subr.mxu0 0.0
  %1128 = vmatpush1.msra.mxu0 0.0
  %1129 = vmatprep.subr.mxu0 0.0
  %1130 = vmatpush1.msra.mxu0 0.0
  %1131 = vmatprep.subr.mxu0 0.0
  %1132 = vmatpush1.msra.mxu0 0.0
  %1133 = vmatprep.subr.mxu0 0.0
  %1134 = vmatpush1.msra.mxu0 0.0
  %1135 = vmatprep.subr.mxu0 0.0
  %1136 = vmatpush1.msra.mxu0 0.0
  %1137 = vmatprep.subr.mxu0 0.0
  %1138 = vmatpush1.msra.mxu0 0.0
  %1139 = vmatprep.subr.mxu0 0.0
  %1140 = vmatpush1.msra.mxu0 0.0
  %1141 = vmatprep.mubr.f32.mxu0 0.0
  %1142 = vmatmul.mubr.f32.gmra.mrb[0].mxu0 %v1054
  %v1143 = vpop.f32.mrb[0].mxu0
  %v1144 = vadd.f32 %v1051, %v1143
  %v1145 = vpop.f32.mrb[0].mxu0
  %1146 = vmatprep.mubr.f32.mxu0 0.0
  %1147 = vmatmul.mubr.f32.gmra.mrb[0].mxu0 %v1057
  %v1148 = vpop.f32.mrb[0].mxu0
  %v1149 = vadd.f32 %v1051, %v1148
  %v1150 = vpop.f32.mrb[0].mxu0
  %1151 = vmatprep.mubr.f32.mxu0 0.0
  %1152 = vmatmul.mubr.f32.gmra.mrb[0].mxu0 %v1060
  %v1153 = vpop.f32.mrb[0].mxu0
  %v1154 = vadd.f32 %v1051, %v1153
  %v1155 = vpop.f32.mrb[0].mxu0
  %1156 = vmatprep.mubr.f32.mxu0 0.0
  %1157 = vmatmul.mubr.f32.gmra.mrb[0].mxu0 %v1063
  %v1158 = vpop.f32.mrb[0].mxu0
  %v1159 = vadd.f32 %v1051, %v1158
  %v1160 = vpop.f32.mrb[0].mxu0
  %1161 = vmatprep.mubr.f32.mxu0 0.0
  %1162 = vmatmul.mubr.f32.gmra.mrb[0].mxu0 %v1066
  %v1163 = vpop.f32.mrb[0].mxu0
  %v1164 = vadd.f32 %v1051, %v1163
  %v1165 = vpop.f32.mrb[0].mxu0
  %1166 = vmatprep.mubr.f32.mxu0 0.0
  %1167 = vmatmul.mubr.f32.gmra.mrb[0].mxu0 %v1069
  %v1168 = vpop.f32.mrb[0].mxu0
  %v1169 = vadd.f32 %v1051, %v1168
  %v1170 = vpop.f32.mrb[0].mxu0
  %1171 = vmatprep.mubr.f32.mxu0 0.0
  %1172 = vmatmul.mubr.f32.gmra.mrb[0].mxu0 %v1072
  %v1173 = vpop.f32.mrb[0].mxu0
  %v1174 = vadd.f32 %v1051, %v1173
  %v1175 = vpop.f32.mrb[0].mxu0
  %1176 = vmatprep.mubr.f32.mxu0 0.0
  %1177 = vmatmul.mubr.f32.gmra.mrb[0].mxu0 %v1075
  %v1178 = vpop.f32.mrb[0].mxu0
  %v1179 = vadd.f32 %v1051, %v1178
  %v1180 = vpop.f32.mrb[0].mxu0
  %1181 = vdwg.mxu0
  %1182 = vst [vmem:[#allocation3] sm:$0xff] %v1144
  %1183 = vst [vmem:[#allocation3 + $0x8] sm:$0xff] %v1149
  %1184 = vst [vmem:[#allocation3 + $0x10] sm:$0xff] %v1154
  %1185 = vst [vmem:[#allocation3 + $0x18] sm:$0xff] %v1159
  %1186 = vst [vmem:[#allocation3 + $0x20] sm:$0xff] %v1164
  %1187 = vst [vmem:[#allocation3 + $0x28] sm:$0xff] %v1169
  %1188 = vst [vmem:[#allocation3 + $0x30] sm:$0xff] %v1174
  %1189 = vst [vmem:[#allocation3 + $0x38] sm:$0xff] %v1179
  %v1190 = vld [vmem:[#allocation3] sm:$0xff]
  %1191 = vmatprep.subr.mxu0 0.0
  %1192 = vmatpush1.msra.mxu0 %v1034
  %1193 = vmatprep.subr.mxu0 0.0
  %1194 = vmatpush1.msra.mxu0 %v1035
  %1195 = vmatprep.subr.mxu0 0.0
  %1196 = vmatpush1.msra.mxu0 %v1036
  %1197 = vmatprep.subr.mxu0 0.0
  %1198 = vmatpush1.msra.mxu0 %v1037
  %1199 = vmatprep.subr.mxu0 0.0
  %1200 = vmatpush1.msra.mxu0 0.0
  %1201 = vmatprep.subr.mxu0 0.0
  %1202 = vmatpush1.msra.mxu0 0.0
  %1203 = vmatprep.subr.mxu0 0.0
  %1204 = vmatpush1.msra.mxu0 0.0
  %1205 = vmatprep.subr.mxu0 0.0
  %1206 = vmatpush1.msra.mxu0 0.0
  %1207 = vmatprep.subr.mxu0 0.0
  %1208 = vmatpush1.msra.mxu0 0.0
  %1209 = vmatprep.subr.mxu0 0.0
  %1210 = vmatpush1.msra.mxu0 0.0
  %1211 = vmatprep.subr.mxu0 0.0
  %1212 = vmatpush1.msra.mxu0 0.0
  %1213 = vmatprep.subr.mxu0 0.0
  %1214 = vmatpush1.msra.mxu0 0.0
  %1215 = vmatprep.subr.mxu0 0.0
  %1216 = vmatpush1.msra.mxu0 0.0
  %1217 = vmatprep.subr.mxu0 0.0
  %1218 = vmatpush1.msra.mxu0 0.0
  %1219 = vmatprep.subr.mxu0 0.0
  %1220 = vmatpush1.msra.mxu0 0.0
  %1221 = vmatprep.subr.mxu0 0.0
  %1222 = vmatpush1.msra.mxu0 0.0
  %1223 = vmatprep.subr.mxu0 0.0
  %1224 = vmatpush1.msra.mxu0 0.0
  %1225 = vmatprep.subr.mxu0 0.0
  %1226 = vmatpush1.msra.mxu0 0.0
  %1227 = vmatprep.subr.mxu0 0.0
  %1228 = vmatpush1.msra.mxu0 0.0
  %1229 = vmatprep.subr.mxu0 0.0
  %1230 = vmatpush1.msra.mxu0 0.0
  %1231 = vmatprep.subr.mxu0 0.0
  %1232 = vmatpush1.msra.mxu0 0.0
  %1233 = vmatprep.subr.mxu0 0.0
  %1234 = vmatpush1.msra.mxu0 0.0
  %1235 = vmatprep.subr.mxu0 0.0
  %1236 = vmatpush1.msra.mxu0 0.0
  %1237 = vmatprep.subr.mxu0 0.0
  %1238 = vmatpush1.msra.mxu0 0.0
  %1239 = vmatprep.subr.mxu0 0.0
  %1240 = vmatpush1.msra.mxu0 0.0
  %1241 = vmatprep.subr.mxu0 0.0
  %1242 = vmatpush1.msra.mxu0 0.0
  %1243 = vmatprep.subr.mxu0 0.0
  %1244 = vmatpush1.msra.mxu0 0.0
  %1245 = vmatprep.subr.mxu0 0.0
  %1246 = vmatpush1.msra.mxu0 0.0
  %1247 = vmatprep.subr.mxu0 0.0
  %1248 = vmatpush1.msra.mxu0 0.0
  %1249 = vmatprep.subr.mxu0 0.0
  %1250 = vmatpush1.msra.mxu0 0.0
  %1251 = vmatprep.subr.mxu0 0.0
  %1252 = vmatpush1.msra.mxu0 0.0
  %1253 = vmatprep.subr.mxu0 0.0
  %1254 = vmatpush1.msra.mxu0 0.0
  %1255 = vmatprep.mubr.f32.mxu0 0.0
  %1256 = vmatmul.mubr.f32.gmra.mrb[0].mxu0 %v193
  %v1257 = vpop.f32.mrb[0].mxu0
  %v1258 = vadd.f32 0.0, %v1257
  %v1259 = vpop.f32.mrb[0].mxu0
  %1260 = vdwg.mxu0
  %v1261 = vadd.f32 %v1190, %v1258
  %v1262 = vxor.u32 %v1261, 2147483648
  %v1263 = vmul.f32 %v1262, 1.442695
  %v1264 = vpow.pop %v1263
  %v1265 = vadd.f32 %v1264, 1.0
  %v1266 = vrcp.pop %v1265
  %v1267 = vmul.f32 1.0, %v1266
  %v1268 = vtanh.pop %v1261
  %v1269 = vmul.f32 %v1267, 0.0
  %1271 = vrot.lane.b32.xlu0 %v1268, 64
  %v1272 = vpop.permute.xlu0 %1271
  %v1274 = vmul.f32 %v1267, %v1272
  %1276 = vrot.lane.b32.xlu0 %v1274, 32
  %v1277 = vpop.permute.xlu0 %1276
  %v1279 = vadd.f32 %v1269, %v1277
  %v1280 = vtanh.pop %v1279
  %1282 = vrot.lane.b32.xlu0 %v1280, 64
  %v1283 = vpop.permute.xlu0 %1282
  %v1285 = vmul.f32 %v1267, %v1283
  %1287 = vrot.lane.b32.xlu0 %v1285, 32
  %v1288 = vpop.permute.xlu0 %1287
  %1290 = vst.msk [vmem:[#allocation2] sm:$0xff] %vm191, %v1288
  %v1291 = vld [vmem:[%s295] sm:$0xff]
  %v1292 = vsel %vm191, %v1288, 0
  %1294 = vmatprep.subr.mxu0 0.0
  %1295 = vmatpush1.msra.mxu0 %v1034
  %1296 = vmatprep.subr.mxu0 0.0
  %1297 = vmatpush1.msra.mxu0 %v1035
  %1298 = vmatprep.subr.mxu0 0.0
  %1299 = vmatpush1.msra.mxu0 %v1036
  %1300 = vmatprep.subr.mxu0 0.0
  %1301 = vmatpush1.msra.mxu0 %v1037
  %1302 = vmatprep.subr.mxu0 0.0
  %1303 = vmatpush1.msra.mxu0 0.0
  %1304 = vmatprep.subr.mxu0 0.0
  %1305 = vmatpush1.msra.mxu0 0.0
  %1306 = vmatprep.subr.mxu0 0.0
  %1307 = vmatpush1.msra.mxu0 0.0
  %1308 = vmatprep.subr.mxu0 0.0
  %1309 = vmatpush1.msra.mxu0 0.0
  %1310 = vmatprep.subr.mxu0 0.0
  %1311 = vmatpush1.msra.mxu0 0.0
  %1312 = vmatprep.subr.mxu0 0.0
  %1313 = vmatpush1.msra.mxu0 0.0
  %1314 = vmatprep.subr.mxu0 0.0
  %1315 = vmatpush1.msra.mxu0 0.0
  %1316 = vmatprep.subr.mxu0 0.0
  %1317 = vmatpush1.msra.mxu0 0.0
  %1318 = vmatprep.subr.mxu0 0.0
  %1319 = vmatpush1.msra.mxu0 0.0
  %1320 = vmatprep.subr.mxu0 0.0
  %1321 = vmatpush1.msra.mxu0 0.0
  %1322 = vmatprep.subr.mxu0 0.0
  %1323 = vmatpush1.msra.mxu0 0.0
  %1324 = vmatprep.subr.mxu0 0.0
  %1325 = vmatpush1.msra.mxu0 0.0
  %1326 = vmatprep.subr.mxu0 0.0
  %1327 = vmatpush1.msra.mxu0 0.0
  %1328 = vmatprep.subr.mxu0 0.0
  %1329 = vmatpush1.msra.mxu0 0.0
  %1330 = vmatprep.subr.mxu0 0.0
  %1331 = vmatpush1.msra.mxu0 0.0
  %1332 = vmatprep.subr.mxu0 0.0
  %1333 = vmatpush1.msra.mxu0 0.0
  %1334 = vmatprep.subr.mxu0 0.0
  %1335 = vmatpush1.msra.mxu0 0.0
  %1336 = vmatprep.subr.mxu0 0.0
  %1337 = vmatpush1.msra.mxu0 0.0
  %1338 = vmatprep.subr.mxu0 0.0
  %1339 = vmatpush1.msra.mxu0 0.0
  %1340 = vmatprep.subr.mxu0 0.0
  %1341 = vmatpush1.msra.mxu0 0.0
  %1342 = vmatprep.subr.mxu0 0.0
  %1343 = vmatpush1.msra.mxu0 0.0
  %1344 = vmatprep.subr.mxu0 0.0
  %1345 = vmatpush1.msra.mxu0 0.0
  %1346 = vmatprep.subr.mxu0 0.0
  %1347 = vmatpush1.msra.mxu0 0.0
  %1348 = vmatprep.subr.mxu0 0.0
  %1349 = vmatpush1.msra.mxu0 0.0
  %1350 = vmatprep.subr.mxu0 0.0
  %1351 = vmatpush1.msra.mxu0 0.0
  %1352 = vmatprep.subr.mxu0 0.0
  %1353 = vmatpush1.msra.mxu0 0.0
  %1354 = vmatprep.subr.mxu0 0.0
  %1355 = vmatpush1.msra.mxu0 0.0
  %1356 = vmatprep.subr.mxu0 0.0
  %1357 = vmatpush1.msra.mxu0 0.0
  %1358 = vmatprep.mubr.f32.mxu0 0.0
  %1359 = vmatmul.mubr.f32.gmra.mrb[0].mxu0 %v1292
  %v1360 = vpop.f32.mrb[0].mxu0
  %v1361 = vadd.f32 0.0, %v1360
  %v1362 = vpop.f32.mrb[0].mxu0
  %1363 = vdwg.mxu0
  %v1364 = vadd.f32 %v1291, %v1361
  %v1365 = vxor.u32 %v1364, 2147483648
  %v1366 = vmul.f32 %v1365, 1.442695
  %v1367 = vpow.pop %v1366
  %v1368 = vadd.f32 %v1367, 1.0
  %v1369 = vrcp.pop %v1368
  %v1370 = vmul.f32 1.0, %v1369
  %v1371 = vtanh.pop %v1364
  %v1372 = vmul.f32 %v1370, %v1279
  %1374 = vrot.lane.b32.xlu0 %v1371, 64
  %v1375 = vpop.permute.xlu0 %1374
  %v1377 = vmul.f32 %v1370, %v1375
  %1379 = vrot.lane.b32.xlu0 %v1377, 32
  %v1380 = vpop.permute.xlu0 %1379
  %v1382 = vadd.f32 %v1372, %v1380
  %v1383 = vtanh.pop %v1382
  %1385 = vrot.lane.b32.xlu0 %v1383, 64
  %v1386 = vpop.permute.xlu0 %1385
  %v1388 = vmul.f32 %v1370, %v1386
  %1390 = vrot.lane.b32.xlu0 %v1388, 32
  %v1391 = vpop.permute.xlu0 %1390
  %1393 = vst.msk [vmem:[%s398] sm:$0xff] %vm191, %v1391
  %v1394 = vld [vmem:[%s400] sm:$0xff]
  %v1395 = vsel %vm191, %v1391, 0
  %1397 = vmatprep.subr.mxu0 0.0
  %1398 = vmatpush1.msra.mxu0 %v1034
  %1399 = vmatprep.subr.mxu0 0.0
  %1400 = vmatpush1.msra.mxu0 %v1035
  %1401 = vmatprep.subr.mxu0 0.0
  %1402 = vmatpush1.msra.mxu0 %v1036
  %1403 = vmatprep.subr.mxu0 0.0
  %1404 = vmatpush1.msra.mxu0 %v1037
  %1405 = vmatprep.subr.mxu0 0.0
  %1406 = vmatpush1.msra.mxu0 0.0
  %1407 = vmatprep.subr.mxu0 0.0
  %1408 = vmatpush1.msra.mxu0 0.0
  %1409 = vmatprep.subr.mxu0 0.0
  %1410 = vmatpush1.msra.mxu0 0.0
  %1411 = vmatprep.subr.mxu0 0.0
  %1412 = vmatpush1.msra.mxu0 0.0
  %1413 = vmatprep.subr.mxu0 0.0
  %1414 = vmatpush1.msra.mxu0 0.0
  %1415 = vmatprep.subr.mxu0 0.0
  %1416 = vmatpush1.msra.mxu0 0.0
  %1417 = vmatprep.subr.mxu0 0.0
  %1418 = vmatpush1.msra.mxu0 0.0
  %1419 = vmatprep.subr.mxu0 0.0
  %1420 = vmatpush1.msra.mxu0 0.0
  %1421 = vmatprep.subr.mxu0 0.0
  %1422 = vmatpush1.msra.mxu0 0.0
  %1423 = vmatprep.subr.mxu0 0.0
  %1424 = vmatpush1.msra.mxu0 0.0
  %1425 = vmatprep.subr.mxu0 0.0
  %1426 = vmatpush1.msra.mxu0 0.0
  %1427 = vmatprep.subr.mxu0 0.0
  %1428 = vmatpush1.msra.mxu0 0.0
  %1429 = vmatprep.subr.mxu0 0.0
  %1430 = vmatpush1.msra.mxu0 0.0
  %1431 = vmatprep.subr.mxu0 0.0
  %1432 = vmatpush1.msra.mxu0 0.0
  %1433 = vmatprep.subr.mxu0 0.0
  %1434 = vmatpush1.msra.mxu0 0.0
  %1435 = vmatprep.subr.mxu0 0.0
  %1436 = vmatpush1.msra.mxu0 0.0
  %1437 = vmatprep.subr.mxu0 0.0
  %1438 = vmatpush1.msra.mxu0 0.0
  %1439 = vmatprep.subr.mxu0 0.0
  %1440 = vmatpush1.msra.mxu0 0.0
  %1441 = vmatprep.subr.mxu0 0.0
  %1442 = vmatpush1.msra.mxu0 0.0
  %1443 = vmatprep.subr.mxu0 0.0
  %1444 = vmatpush1.msra.mxu0 0.0
  %1445 = vmatprep.subr.mxu0 0.0
  %1446 = vmatpush1.msra.mxu0 0.0
  %1447 = vmatprep.subr.mxu0 0.0
  %1448 = vmatpush1.msra.mxu0 0.0
  %1449 = vmatprep.subr.mxu0 0.0
  %1450 = vmatpush1.msra.mxu0 0.0
  %1451 = vmatprep.subr.mxu0 0.0
  %1452 = vmatpush1.msra.mxu0 0.0
  %1453 = vmatprep.subr.mxu0 0.0
  %1454 = vmatpush1.msra.mxu0 0.0
  %1455 = vmatprep.subr.mxu0 0.0
  %1456 = vmatpush1.msra.mxu0 0.0
  %1457 = vmatprep.subr.mxu0 0.0
  %1458 = vmatpush1.msra.mxu0 0.0
  %1459 = vmatprep.subr.mxu0 0.0
  %1460 = vmatpush1.msra.mxu0 0.0
  %1461 = vmatprep.mubr.f32.mxu0 0.0
  %1462 = vmatmul.mubr.f32.gmra.mrb[0].mxu0 %v1395
  %v1463 = vpop.f32.mrb[0].mxu0
  %v1464 = vadd.f32 0.0, %v1463
  %v1465 = vpop.f32.mrb[0].mxu0
  %1466 = vdwg.mxu0
  %v1467 = vadd.f32 %v1394, %v1464
  %v1468 = vxor.u32 %v1467, 2147483648
  %v1469 = vmul.f32 %v1468, 1.442695
  %v1470 = vpow.pop %v1469
  %v1471 = vadd.f32 %v1470, 1.0
  %v1472 = vrcp.pop %v1471
  %v1473 = vmul.f32 1.0, %v1472
  %v1474 = vtanh.pop %v1467
  %v1475 = vmul.f32 %v1473, %v1382
  %1477 = vrot.lane.b32.xlu0 %v1474, 64
  %v1478 = vpop.permute.xlu0 %1477
  %v1480 = vmul.f32 %v1473, %v1478
  %1482 = vrot.lane.b32.xlu0 %v1480, 32
  %v1483 = vpop.permute.xlu0 %1482
  %v1485 = vadd.f32 %v1475, %v1483
  %v1486 = vtanh.pop %v1485
  %1488 = vrot.lane.b32.xlu0 %v1486, 64
  %v1489 = vpop.permute.xlu0 %1488
  %v1491 = vmul.f32 %v1473, %v1489
  %1493 = vrot.lane.b32.xlu0 %v1491, 32
  %v1494 = vpop.permute.xlu0 %1493
  %1496 = vst.msk [vmem:[%s503] sm:$0xff] %vm191, %v1494
  %v1497 = vld [vmem:[%s505] sm:$0xff]
  %v1498 = vsel %vm191, %v1494, 0
  %1500 = vmatprep.subr.mxu0 0.0
  %1501 = vmatpush1.msra.mxu0 %v1034
  %1502 = vmatprep.subr.mxu0 0.0
  %1503 = vmatpush1.msra.mxu0 %v1035
  %1504 = vmatprep.subr.mxu0 0.0
  %1505 = vmatpush1.msra.mxu0 %v1036
  %1506 = vmatprep.subr.mxu0 0.0
  %1507 = vmatpush1.msra.mxu0 %v1037
  %1508 = vmatprep.subr.mxu0 0.0
  %1509 = vmatpush1.msra.mxu0 0.0
  %1510 = vmatprep.subr.mxu0 0.0
  %1511 = vmatpush1.msra.mxu0 0.0
  %1512 = vmatprep.subr.mxu0 0.0
  %1513 = vmatpush1.msra.mxu0 0.0
  %1514 = vmatprep.subr.mxu0 0.0
  %1515 = vmatpush1.msra.mxu0 0.0
  %1516 = vmatprep.subr.mxu0 0.0
  %1517 = vmatpush1.msra.mxu0 0.0
  %1518 = vmatprep.subr.mxu0 0.0
  %1519 = vmatpush1.msra.mxu0 0.0
  %1520 = vmatprep.subr.mxu0 0.0
  %1521 = vmatpush1.msra.mxu0 0.0
  %1522 = vmatprep.subr.mxu0 0.0
  %1523 = vmatpush1.msra.mxu0 0.0
  %1524 = vmatprep.subr.mxu0 0.0
  %1525 = vmatpush1.msra.mxu0 0.0
  %1526 = vmatprep.subr.mxu0 0.0
  %1527 = vmatpush1.msra.mxu0 0.0
  %1528 = vmatprep.subr.mxu0 0.0
  %1529 = vmatpush1.msra.mxu0 0.0
  %1530 = vmatprep.subr.mxu0 0.0
  %1531 = vmatpush1.msra.mxu0 0.0
  %1532 = vmatprep.subr.mxu0 0.0
  %1533 = vmatpush1.msra.mxu0 0.0
  %1534 = vmatprep.subr.mxu0 0.0
  %1535 = vmatpush1.msra.mxu0 0.0
  %1536 = vmatprep.subr.mxu0 0.0
  %1537 = vmatpush1.msra.mxu0 0.0
  %1538 = vmatprep.subr.mxu0 0.0
  %1539 = vmatpush1.msra.mxu0 0.0
  %1540 = vmatprep.subr.mxu0 0.0
  %1541 = vmatpush1.msra.mxu0 0.0
  %1542 = vmatprep.subr.mxu0 0.0
  %1543 = vmatpush1.msra.mxu0 0.0
  %1544 = vmatprep.subr.mxu0 0.0
  %1545 = vmatpush1.msra.mxu0 0.0
  %1546 = vmatprep.subr.mxu0 0.0
  %1547 = vmatpush1.msra.mxu0 0.0
  %1548 = vmatprep.subr.mxu0 0.0
  %1549 = vmatpush1.msra.mxu0 0.0
  %1550 = vmatprep.subr.mxu0 0.0
  %1551 = vmatpush1.msra.mxu0 0.0
  %1552 = vmatprep.subr.mxu0 0.0
  %1553 = vmatpush1.msra.mxu0 0.0
  %1554 = vmatprep.subr.mxu0 0.0
  %1555 = vmatpush1.msra.mxu0 0.0
  %1556 = vmatprep.subr.mxu0 0.0
  %1557 = vmatpush1.msra.mxu0 0.0
  %1558 = vmatprep.subr.mxu0 0.0
  %1559 = vmatpush1.msra.mxu0 0.0
  %1560 = vmatprep.subr.mxu0 0.0
  %1561 = vmatpush1.msra.mxu0 0.0
  %1562 = vmatprep.subr.mxu0 0.0
  %1563 = vmatpush1.msra.mxu0 0.0
  %1564 = vmatprep.mubr.f32.mxu0 0.0
  %1565 = vmatmul.mubr.f32.gmra.mrb[0].mxu0 %v1498
  %v1566 = vpop.f32.mrb[0].mxu0
  %v1567 = vadd.f32 0.0, %v1566
  %v1568 = vpop.f32.mrb[0].mxu0
  %1569 = vdwg.mxu0
  %v1570 = vadd.f32 %v1497, %v1567
  %v1571 = vxor.u32 %v1570, 2147483648
  %v1572 = vmul.f32 %v1571, 1.442695
  %v1573 = vpow.pop %v1572
  %v1574 = vadd.f32 %v1573, 1.0
  %v1575 = vrcp.pop %v1574
  %v1576 = vmul.f32 1.0, %v1575
  %v1577 = vtanh.pop %v1570
  %v1578 = vmul.f32 %v1576, %v1485
  %1580 = vrot.lane.b32.xlu0 %v1577, 64
  %v1581 = vpop.permute.xlu0 %1580
  %v1583 = vmul.f32 %v1576, %v1581
  %1585 = vrot.lane.b32.xlu0 %v1583, 32
  %v1586 = vpop.permute.xlu0 %1585
  %v1588 = vadd.f32 %v1578, %v1586
  %v1589 = vtanh.pop %v1588
  %1591 = vrot.lane.b32.xlu0 %v1589, 64
  %v1592 = vpop.permute.xlu0 %1591
  %v1594 = vmul.f32 %v1576, %v1592
  %1596 = vrot.lane.b32.xlu0 %v1594, 32
  %v1597 = vpop.permute.xlu0 %1596
  %1599 = vst.msk [vmem:[%s608] sm:$0xff] %vm191, %v1597
  %v1600 = vld [vmem:[%s610] sm:$0xff]
  %v1601 = vsel %vm191, %v1597, 0
  %1603 = vmatprep.subr.mxu0 0.0
  %1604 = vmatpush1.msra.mxu0 %v1034
  %1605 = vmatprep.subr.mxu0 0.0
  %1606 = vmatpush1.msra.mxu0 %v1035
  %1607 = vmatprep.subr.mxu0 0.0
  %1608 = vmatpush1.msra.mxu0 %v1036
  %1609 = vmatprep.subr.mxu0 0.0
  %1610 = vmatpush1.msra.mxu0 %v1037
  %1611 = vmatprep.subr.mxu0 0.0
  %1612 = vmatpush1.msra.mxu0 0.0
  %1613 = vmatprep.subr.mxu0 0.0
  %1614 = vmatpush1.msra.mxu0 0.0
  %1615 = vmatprep.subr.mxu0 0.0
  %1616 = vmatpush1.msra.mxu0 0.0
  %1617 = vmatprep.subr.mxu0 0.0
  %1618 = vmatpush1.msra.mxu0 0.0
  %1619 = vmatprep.subr.mxu0 0.0
  %1620 = vmatpush1.msra.mxu0 0.0
  %1621 = vmatprep.subr.mxu0 0.0
  %1622 = vmatpush1.msra.mxu0 0.0
  %1623 = vmatprep.subr.mxu0 0.0
  %1624 = vmatpush1.msra.mxu0 0.0
  %1625 = vmatprep.subr.mxu0 0.0
  %1626 = vmatpush1.msra.mxu0 0.0
  %1627 = vmatprep.subr.mxu0 0.0
  %1628 = vmatpush1.msra.mxu0 0.0
  %1629 = vmatprep.subr.mxu0 0.0
  %1630 = vmatpush1.msra.mxu0 0.0
  %1631 = vmatprep.subr.mxu0 0.0
  %1632 = vmatpush1.msra.mxu0 0.0
  %1633 = vmatprep.subr.mxu0 0.0
  %1634 = vmatpush1.msra.mxu0 0.0
  %1635 = vmatprep.subr.mxu0 0.0
  %1636 = vmatpush1.msra.mxu0 0.0
  %1637 = vmatprep.subr.mxu0 0.0
  %1638 = vmatpush1.msra.mxu0 0.0
  %1639 = vmatprep.subr.mxu0 0.0
  %1640 = vmatpush1.msra.mxu0 0.0
  %1641 = vmatprep.subr.mxu0 0.0
  %1642 = vmatpush1.msra.mxu0 0.0
  %1643 = vmatprep.subr.mxu0 0.0
  %1644 = vmatpush1.msra.mxu0 0.0
  %1645 = vmatprep.subr.mxu0 0.0
  %1646 = vmatpush1.msra.mxu0 0.0
  %1647 = vmatprep.subr.mxu0 0.0
  %1648 = vmatpush1.msra.mxu0 0.0
  %1649 = vmatprep.subr.mxu0 0.0
  %1650 = vmatpush1.msra.mxu0 0.0
  %1651 = vmatprep.subr.mxu0 0.0
  %1652 = vmatpush1.msra.mxu0 0.0
  %1653 = vmatprep.subr.mxu0 0.0
  %1654 = vmatpush1.msra.mxu0 0.0
  %1655 = vmatprep.subr.mxu0 0.0
  %1656 = vmatpush1.msra.mxu0 0.0
  %1657 = vmatprep.subr.mxu0 0.0
  %1658 = vmatpush1.msra.mxu0 0.0
  %1659 = vmatprep.subr.mxu0 0.0
  %1660 = vmatpush1.msra.mxu0 0.0
  %1661 = vmatprep.subr.mxu0 0.0
  %1662 = vmatpush1.msra.mxu0 0.0
  %1663 = vmatprep.subr.mxu0 0.0
  %1664 = vmatpush1.msra.mxu0 0.0
  %1665 = vmatprep.subr.mxu0 0.0
  %1666 = vmatpush1.msra.mxu0 0.0
  %1667 = vmatprep.mubr.f32.mxu0 0.0
  %1668 = vmatmul.mubr.f32.gmra.mrb[0].mxu0 %v1601
  %v1669 = vpop.f32.mrb[0].mxu0
  %v1670 = vadd.f32 0.0, %v1669
  %v1671 = vpop.f32.mrb[0].mxu0
  %1672 = vdwg.mxu0
  %v1673 = vadd.f32 %v1600, %v1670
  %v1674 = vxor.u32 %v1673, 2147483648
  %v1675 = vmul.f32 %v1674, 1.442695
  %v1676 = vpow.pop %v1675
  %v1677 = vadd.f32 %v1676, 1.0
  %v1678 = vrcp.pop %v1677
  %v1679 = vmul.f32 1.0, %v1678
  %v1680 = vtanh.pop %v1673
  %v1681 = vmul.f32 %v1679, %v1588
  %1683 = vrot.lane.b32.xlu0 %v1680, 64
  %v1684 = vpop.permute.xlu0 %1683
  %v1686 = vmul.f32 %v1679, %v1684
  %1688 = vrot.lane.b32.xlu0 %v1686, 32
  %v1689 = vpop.permute.xlu0 %1688
  %v1691 = vadd.f32 %v1681, %v1689
  %v1692 = vtanh.pop %v1691
  %1694 = vrot.lane.b32.xlu0 %v1692, 64
  %v1695 = vpop.permute.xlu0 %1694
  %v1697 = vmul.f32 %v1679, %v1695
  %1699 = vrot.lane.b32.xlu0 %v1697, 32
  %v1700 = vpop.permute.xlu0 %1699
  %1702 = vst.msk [vmem:[%s713] sm:$0xff] %vm191, %v1700
  %v1703 = vld [vmem:[%s715] sm:$0xff]
  %v1704 = vsel %vm191, %v1700, 0
  %1706 = vmatprep.subr.mxu0 0.0
  %1707 = vmatpush1.msra.mxu0 %v1034
  %1708 = vmatprep.subr.mxu0 0.0
  %1709 = vmatpush1.msra.mxu0 %v1035
  %1710 = vmatprep.subr.mxu0 0.0
  %1711 = vmatpush1.msra.mxu0 %v1036
  %1712 = vmatprep.subr.mxu0 0.0
  %1713 = vmatpush1.msra.mxu0 %v1037
  %1714 = vmatprep.subr.mxu0 0.0
  %1715 = vmatpush1.msra.mxu0 0.0
  %1716 = vmatprep.subr.mxu0 0.0
  %1717 = vmatpush1.msra.mxu0 0.0
  %1718 = vmatprep.subr.mxu0 0.0
  %1719 = vmatpush1.msra.mxu0 0.0
  %1720 = vmatprep.subr.mxu0 0.0
  %1721 = vmatpush1.msra.mxu0 0.0
  %1722 = vmatprep.subr.mxu0 0.0
  %1723 = vmatpush1.msra.mxu0 0.0
  %1724 = vmatprep.subr.mxu0 0.0
  %1725 = vmatpush1.msra.mxu0 0.0
  %1726 = vmatprep.subr.mxu0 0.0
  %1727 = vmatpush1.msra.mxu0 0.0
  %1728 = vmatprep.subr.mxu0 0.0
  %1729 = vmatpush1.msra.mxu0 0.0
  %1730 = vmatprep.subr.mxu0 0.0
  %1731 = vmatpush1.msra.mxu0 0.0
  %1732 = vmatprep.subr.mxu0 0.0
  %1733 = vmatpush1.msra.mxu0 0.0
  %1734 = vmatprep.subr.mxu0 0.0
  %1735 = vmatpush1.msra.mxu0 0.0
  %1736 = vmatprep.subr.mxu0 0.0
  %1737 = vmatpush1.msra.mxu0 0.0
  %1738 = vmatprep.subr.mxu0 0.0
  %1739 = vmatpush1.msra.mxu0 0.0
  %1740 = vmatprep.subr.mxu0 0.0
  %1741 = vmatpush1.msra.mxu0 0.0
  %1742 = vmatprep.subr.mxu0 0.0
  %1743 = vmatpush1.msra.mxu0 0.0
  %1744 = vmatprep.subr.mxu0 0.0
  %1745 = vmatpush1.msra.mxu0 0.0
  %1746 = vmatprep.subr.mxu0 0.0
  %1747 = vmatpush1.msra.mxu0 0.0
  %1748 = vmatprep.subr.mxu0 0.0
  %1749 = vmatpush1.msra.mxu0 0.0
  %1750 = vmatprep.subr.mxu0 0.0
  %1751 = vmatpush1.msra.mxu0 0.0
  %1752 = vmatprep.subr.mxu0 0.0
  %1753 = vmatpush1.msra.mxu0 0.0
  %1754 = vmatprep.subr.mxu0 0.0
  %1755 = vmatpush1.msra.mxu0 0.0
  %1756 = vmatprep.subr.mxu0 0.0
  %1757 = vmatpush1.msra.mxu0 0.0
  %1758 = vmatprep.subr.mxu0 0.0
  %1759 = vmatpush1.msra.mxu0 0.0
  %1760 = vmatprep.subr.mxu0 0.0
  %1761 = vmatpush1.msra.mxu0 0.0
  %1762 = vmatprep.subr.mxu0 0.0
  %1763 = vmatpush1.msra.mxu0 0.0
  %1764 = vmatprep.subr.mxu0 0.0
  %1765 = vmatpush1.msra.mxu0 0.0
  %1766 = vmatprep.subr.mxu0 0.0
  %1767 = vmatpush1.msra.mxu0 0.0
  %1768 = vmatprep.subr.mxu0 0.0
  %1769 = vmatpush1.msra.mxu0 0.0
  %1770 = vmatprep.mubr.f32.mxu0 0.0
  %1771 = vmatmul.mubr.f32.gmra.mrb[0].mxu0 %v1704
  %v1772 = vpop.f32.mrb[0].mxu0
  %v1773 = vadd.f32 0.0, %v1772
  %v1774 = vpop.f32.mrb[0].mxu0
  %1775 = vdwg.mxu0
  %v1776 = vadd.f32 %v1703, %v1773
  %v1777 = vxor.u32 %v1776, 2147483648
  %v1778 = vmul.f32 %v1777, 1.442695
  %v1779 = vpow.pop %v1778
  %v1780 = vadd.f32 %v1779, 1.0
  %v1781 = vrcp.pop %v1780
  %v1782 = vmul.f32 1.0, %v1781
  %v1783 = vtanh.pop %v1776
  %v1784 = vmul.f32 %v1782, %v1691
  %1786 = vrot.lane.b32.xlu0 %v1783, 64
  %v1787 = vpop.permute.xlu0 %1786
  %v1789 = vmul.f32 %v1782, %v1787
  %1791 = vrot.lane.b32.xlu0 %v1789, 32
  %v1792 = vpop.permute.xlu0 %1791
  %v1794 = vadd.f32 %v1784, %v1792
  %v1795 = vtanh.pop %v1794
  %1797 = vrot.lane.b32.xlu0 %v1795, 64
  %v1798 = vpop.permute.xlu0 %1797
  %v1800 = vmul.f32 %v1782, %v1798
  %1802 = vrot.lane.b32.xlu0 %v1800, 32
  %v1803 = vpop.permute.xlu0 %1802
  %1805 = vst.msk [vmem:[%s818] sm:$0xff] %vm191, %v1803
  %v1806 = vld [vmem:[%s820] sm:$0xff]
  %v1807 = vsel %vm191, %v1803, 0
  %1809 = vmatprep.subr.mxu0 0.0
  %1810 = vmatpush1.msra.mxu0 %v1034
  %1811 = vmatprep.subr.mxu0 0.0
  %1812 = vmatpush1.msra.mxu0 %v1035
  %1813 = vmatprep.subr.mxu0 0.0
  %1814 = vmatpush1.msra.mxu0 %v1036
  %1815 = vmatprep.subr.mxu0 0.0
  %1816 = vmatpush1.msra.mxu0 %v1037
  %1817 = vmatprep.subr.mxu0 0.0
  %1818 = vmatpush1.msra.mxu0 0.0
  %1819 = vmatprep.subr.mxu0 0.0
  %1820 = vmatpush1.msra.mxu0 0.0
  %1821 = vmatprep.subr.mxu0 0.0
  %1822 = vmatpush1.msra.mxu0 0.0
  %1823 = vmatprep.subr.mxu0 0.0
  %1824 = vmatpush1.msra.mxu0 0.0
  %1825 = vmatprep.subr.mxu0 0.0
  %1826 = vmatpush1.msra.mxu0 0.0
  %1827 = vmatprep.subr.mxu0 0.0
  %1828 = vmatpush1.msra.mxu0 0.0
  %1829 = vmatprep.subr.mxu0 0.0
  %1830 = vmatpush1.msra.mxu0 0.0
  %1831 = vmatprep.subr.mxu0 0.0
  %1832 = vmatpush1.msra.mxu0 0.0
  %1833 = vmatprep.subr.mxu0 0.0
  %1834 = vmatpush1.msra.mxu0 0.0
  %1835 = vmatprep.subr.mxu0 0.0
  %1836 = vmatpush1.msra.mxu0 0.0
  %1837 = vmatprep.subr.mxu0 0.0
  %1838 = vmatpush1.msra.mxu0 0.0
  %1839 = vmatprep.subr.mxu0 0.0
  %1840 = vmatpush1.msra.mxu0 0.0
  %1841 = vmatprep.subr.mxu0 0.0
  %1842 = vmatpush1.msra.mxu0 0.0
  %1843 = vmatprep.subr.mxu0 0.0
  %1844 = vmatpush1.msra.mxu0 0.0
  %1845 = vmatprep.subr.mxu0 0.0
  %1846 = vmatpush1.msra.mxu0 0.0
  %1847 = vmatprep.subr.mxu0 0.0
  %1848 = vmatpush1.msra.mxu0 0.0
  %1849 = vmatprep.subr.mxu0 0.0
  %1850 = vmatpush1.msra.mxu0 0.0
  %1851 = vmatprep.subr.mxu0 0.0
  %1852 = vmatpush1.msra.mxu0 0.0
  %1853 = vmatprep.subr.mxu0 0.0
  %1854 = vmatpush1.msra.mxu0 0.0
  %1855 = vmatprep.subr.mxu0 0.0
  %1856 = vmatpush1.msra.mxu0 0.0
  %1857 = vmatprep.subr.mxu0 0.0
  %1858 = vmatpush1.msra.mxu0 0.0
  %1859 = vmatprep.subr.mxu0 0.0
  %1860 = vmatpush1.msra.mxu0 0.0
  %1861 = vmatprep.subr.mxu0 0.0
  %1862 = vmatpush1.msra.mxu0 0.0
  %1863 = vmatprep.subr.mxu0 0.0
  %1864 = vmatpush1.msra.mxu0 0.0
  %1865 = vmatprep.subr.mxu0 0.0
  %1866 = vmatpush1.msra.mxu0 0.0
  %1867 = vmatprep.subr.mxu0 0.0
  %1868 = vmatpush1.msra.mxu0 0.0
  %1869 = vmatprep.subr.mxu0 0.0
  %1870 = vmatpush1.msra.mxu0 0.0
  %1871 = vmatprep.subr.mxu0 0.0
  %1872 = vmatpush1.msra.mxu0 0.0
  %1873 = vmatprep.mubr.f32.mxu0 0.0
  %1874 = vmatmul.mubr.f32.gmra.mrb[0].mxu0 %v1807
  %v1875 = vpop.f32.mrb[0].mxu0
  %v1876 = vadd.f32 0.0, %v1875
  %v1877 = vpop.f32.mrb[0].mxu0
  %1878 = vdwg.mxu0
  %v1879 = vadd.f32 %v1806, %v1876
  %v1880 = vxor.u32 %v1879, 2147483648
  %v1881 = vmul.f32 %v1880, 1.442695
  %v1882 = vpow.pop %v1881
  %v1883 = vadd.f32 %v1882, 1.0
  %v1884 = vrcp.pop %v1883
  %v1885 = vmul.f32 1.0, %v1884
  %v1886 = vtanh.pop %v1879
  %v1887 = vmul.f32 %v1885, %v1794
  %1889 = vrot.lane.b32.xlu0 %v1886, 64
  %v1890 = vpop.permute.xlu0 %1889
  %v1892 = vmul.f32 %v1885, %v1890
  %1894 = vrot.lane.b32.xlu0 %v1892, 32
  %v1895 = vpop.permute.xlu0 %1894
  %v1897 = vadd.f32 %v1887, %v1895
  %v1898 = vtanh.pop %v1897
  %1900 = vrot.lane.b32.xlu0 %v1898, 64
  %v1901 = vpop.permute.xlu0 %1900
  %v1903 = vmul.f32 %v1885, %v1901
  %1905 = vrot.lane.b32.xlu0 %v1903, 32
  %v1906 = vpop.permute.xlu0 %1905
  %1908 = vst.msk [vmem:[%s923] sm:$0xff] %vm191, %v1906
  %v1909 = vld [vmem:[%s925] sm:$0xff]
  %v1910 = vsel %vm191, %v1906, 0
  %1912 = vmatprep.subr.mxu0 0.0
  %1913 = vmatpush1.msra.mxu0 %v1034
  %1914 = vmatprep.subr.mxu0 0.0
  %1915 = vmatpush1.msra.mxu0 %v1035
  %1916 = vmatprep.subr.mxu0 0.0
  %1917 = vmatpush1.msra.mxu0 %v1036
  %1918 = vmatprep.subr.mxu0 0.0
  %1919 = vmatpush1.msra.mxu0 %v1037
  %1920 = vmatprep.subr.mxu0 0.0
  %1921 = vmatpush1.msra.mxu0 0.0
  %1922 = vmatprep.subr.mxu0 0.0
  %1923 = vmatpush1.msra.mxu0 0.0
  %1924 = vmatprep.subr.mxu0 0.0
  %1925 = vmatpush1.msra.mxu0 0.0
  %1926 = vmatprep.subr.mxu0 0.0
  %1927 = vmatpush1.msra.mxu0 0.0
  %1928 = vmatprep.subr.mxu0 0.0
  %1929 = vmatpush1.msra.mxu0 0.0
  %1930 = vmatprep.subr.mxu0 0.0
  %1931 = vmatpush1.msra.mxu0 0.0
  %1932 = vmatprep.subr.mxu0 0.0
  %1933 = vmatpush1.msra.mxu0 0.0
  %1934 = vmatprep.subr.mxu0 0.0
  %1935 = vmatpush1.msra.mxu0 0.0
  %1936 = vmatprep.subr.mxu0 0.0
  %1937 = vmatpush1.msra.mxu0 0.0
  %1938 = vmatprep.subr.mxu0 0.0
  %1939 = vmatpush1.msra.mxu0 0.0
  %1940 = vmatprep.subr.mxu0 0.0
  %1941 = vmatpush1.msra.mxu0 0.0
  %1942 = vmatprep.subr.mxu0 0.0
  %1943 = vmatpush1.msra.mxu0 0.0
  %1944 = vmatprep.subr.mxu0 0.0
  %1945 = vmatpush1.msra.mxu0 0.0
  %1946 = vmatprep.subr.mxu0 0.0
  %1947 = vmatpush1.msra.mxu0 0.0
  %1948 = vmatprep.subr.mxu0 0.0
  %1949 = vmatpush1.msra.mxu0 0.0
  %1950 = vmatprep.subr.mxu0 0.0
  %1951 = vmatpush1.msra.mxu0 0.0
  %1952 = vmatprep.subr.mxu0 0.0
  %1953 = vmatpush1.msra.mxu0 0.0
  %1954 = vmatprep.subr.mxu0 0.0
  %1955 = vmatpush1.msra.mxu0 0.0
  %1956 = vmatprep.subr.mxu0 0.0
  %1957 = vmatpush1.msra.mxu0 0.0
  %1958 = vmatprep.subr.mxu0 0.0
  %1959 = vmatpush1.msra.mxu0 0.0
  %1960 = vmatprep.subr.mxu0 0.0
  %1961 = vmatpush1.msra.mxu0 0.0
  %1962 = vmatprep.subr.mxu0 0.0
  %1963 = vmatpush1.msra.mxu0 0.0
  %1964 = vmatprep.subr.mxu0 0.0
  %1965 = vmatpush1.msra.mxu0 0.0
  %1966 = vmatprep.subr.mxu0 0.0
  %1967 = vmatpush1.msra.mxu0 0.0
  %1968 = vmatprep.subr.mxu0 0.0
  %1969 = vmatpush1.msra.mxu0 0.0
  %1970 = vmatprep.subr.mxu0 0.0
  %1971 = vmatpush1.msra.mxu0 0.0
  %1972 = vmatprep.subr.mxu0 0.0
  %1973 = vmatpush1.msra.mxu0 0.0
  %1974 = vmatprep.subr.mxu0 0.0
  %1975 = vmatpush1.msra.mxu0 0.0
  %1976 = vmatprep.mubr.f32.mxu0 0.0
  %1977 = vmatmul.mubr.f32.gmra.mrb[0].mxu0 %v1910
  %v1978 = vpop.f32.mrb[0].mxu0
  %v1979 = vadd.f32 0.0, %v1978
  %v1980 = vpop.f32.mrb[0].mxu0
  %1981 = vdwg.mxu0
  %v1982 = vadd.f32 %v1909, %v1979
  %v1983 = vxor.u32 %v1982, 2147483648
  %v1984 = vmul.f32 %v1983, 1.442695
  %v1985 = vpow.pop %v1984
  %v1986 = vadd.f32 %v1985, 1.0
  %v1987 = vrcp.pop %v1986
  %v1988 = vmul.f32 1.0, %v1987
  %v1989 = vtanh.pop %v1982
  %v1990 = vmul.f32 %v1988, %v1897
  %1992 = vrot.lane.b32.xlu0 %v1989, 64
  %v1993 = vpop.permute.xlu0 %1992
  %v1995 = vmul.f32 %v1988, %v1993
  %1997 = vrot.lane.b32.xlu0 %v1995, 32
  %v1998 = vpop.permute.xlu0 %1997
  %v2000 = vadd.f32 %v1990, %v1998
  %v2001 = vtanh.pop %v2000
  %2003 = vrot.lane.b32.xlu0 %v2001, 64
  %v2004 = vpop.permute.xlu0 %2003
  %v2006 = vmul.f32 %v1988, %v2004
  %2008 = vrot.lane.b32.xlu0 %v2006, 32
  %v2009 = vpop.permute.xlu0 %2008
  %2011 = vst.msk [vmem:[%s1028] sm:$0xff] %vm191, %v2009
  %v2012 = vld [vmem:[#allocation2] sm:$0xff]
  %v2013 = vld [vmem:[#allocation2 + $0x8] sm:$0xff]
  %v2014 = vld [vmem:[#allocation2 + $0x10] sm:$0xff]
  %v2015 = vld [vmem:[#allocation2 + $0x18] sm:$0xff]
  %v2016 = vld [vmem:[#allocation2 + $0x20] sm:$0xff]
  %v2017 = vld [vmem:[#allocation2 + $0x28] sm:$0xff]
  %v2018 = vld [vmem:[#allocation2 + $0x30] sm:$0xff]
  %v2019 = vld [vmem:[#allocation2 + $0x38] sm:$0xff]
  %v2020 = vld [vmem:[%s7] sm:$0xff]
  %v2021 = vld [vmem:[%s7 + $0x8] sm:$0xff]
  %v2022 = vld [vmem:[%s7 + $0x10] sm:$0xff]
  %v2023 = vld [vmem:[%s7 + $0x18] sm:$0xff]
  %v2024 = vld [vmem:[%s8] sm:$0x1]
  %v2026 = vlaneseq
  %v2027 = vshrl.u32 %v2026, 7
  %v2028 = vsub.s32 0, %v2027
  %v2029 = vrot.slane %v2024, %v2028
  %v2032 = vsel %vm191, %v2012, 0
  %v2035 = vsel %vm191, %v2013, 0
  %v2038 = vsel %vm191, %v2014, 0
  %v2041 = vsel %vm191, %v2015, 0
  %v2044 = vsel %vm191, %v2016, 0
  %v2047 = vsel %vm191, %v2017, 0
  %v2050 = vsel %vm191, %v2018, 0
  %v2053 = vsel %vm191, %v2019, 0
  %2055 = vmatprep.subr.mxu0 0.0
  %2056 = vmatpush1.msra.mxu0 %v2020
  %2057 = vmatprep.subr.mxu0 0.0
  %2058 = vmatpush1.msra.mxu0 %v2021
  %2059 = vmatprep.subr.mxu0 0.0
  %2060 = vmatpush1.msra.mxu0 %v2022
  %2061 = vmatprep.subr.mxu0 0.0
  %2062 = vmatpush1.msra.mxu0 %v2023
  %2063 = vmatprep.subr.mxu0 0.0
  %2064 = vmatpush1.msra.mxu0 0.0
  %2065 = vmatprep.subr.mxu0 0.0
  %2066 = vmatpush1.msra.mxu0 0.0
  %2067 = vmatprep.subr.mxu0 0.0
  %2068 = vmatpush1.msra.mxu0 0.0
  %2069 = vmatprep.subr.mxu0 0.0
  %2070 = vmatpush1.msra.mxu0 0.0
  %2071 = vmatprep.subr.mxu0 0.0
  %2072 = vmatpush1.msra.mxu0 0.0
  %2073 = vmatprep.subr.mxu0 0.0
  %2074 = vmatpush1.msra.mxu0 0.0
  %2075 = vmatprep.subr.mxu0 0.0
  %2076 = vmatpush1.msra.mxu0 0.0
  %2077 = vmatprep.subr.mxu0 0.0
  %2078 = vmatpush1.msra.mxu0 0.0
  %2079 = vmatprep.subr.mxu0 0.0
  %2080 = vmatpush1.msra.mxu0 0.0
  %2081 = vmatprep.subr.mxu0 0.0
  %2082 = vmatpush1.msra.mxu0 0.0
  %2083 = vmatprep.subr.mxu0 0.0
  %2084 = vmatpush1.msra.mxu0 0.0
  %2085 = vmatprep.subr.mxu0 0.0
  %2086 = vmatpush1.msra.mxu0 0.0
  %2087 = vmatprep.subr.mxu0 0.0
  %2088 = vmatpush1.msra.mxu0 0.0
  %2089 = vmatprep.subr.mxu0 0.0
  %2090 = vmatpush1.msra.mxu0 0.0
  %2091 = vmatprep.subr.mxu0 0.0
  %2092 = vmatpush1.msra.mxu0 0.0
  %2093 = vmatprep.subr.mxu0 0.0
  %2094 = vmatpush1.msra.mxu0 0.0
  %2095 = vmatprep.subr.mxu0 0.0
  %2096 = vmatpush1.msra.mxu0 0.0
  %2097 = vmatprep.subr.mxu0 0.0
  %2098 = vmatpush1.msra.mxu0 0.0
  %2099 = vmatprep.subr.mxu0 0.0
  %2100 = vmatpush1.msra.mxu0 0.0
  %2101 = vmatprep.subr.mxu0 0.0
  %2102 = vmatpush1.msra.mxu0 0.0
  %2103 = vmatprep.subr.mxu0 0.0
  %2104 = vmatpush1.msra.mxu0 0.0
  %2105 = vmatprep.subr.mxu0 0.0
  %2106 = vmatpush1.msra.mxu0 0.0
  %2107 = vmatprep.subr.mxu0 0.0
  %2108 = vmatpush1.msra.mxu0 0.0
  %2109 = vmatprep.subr.mxu0 0.0
  %2110 = vmatpush1.msra.mxu0 0.0
  %2111 = vmatprep.subr.mxu0 0.0
  %2112 = vmatpush1.msra.mxu0 0.0
  %2113 = vmatprep.subr.mxu0 0.0
  %2114 = vmatpush1.msra.mxu0 0.0
  %2115 = vmatprep.subr.mxu0 0.0
  %2116 = vmatpush1.msra.mxu0 0.0
  %2117 = vmatprep.subr.mxu0 0.0
  %2118 = vmatpush1.msra.mxu0 0.0
  %2119 = vmatprep.mubr.f32.mxu0 0.0
  %2120 = vmatmul.mubr.f32.gmra.mrb[0].mxu0 %v2032
  %v2121 = vpop.f32.mrb[0].mxu0
  %v2122 = vadd.f32 %v2029, %v2121
  %v2123 = vpop.f32.mrb[0].mxu0
  %2124 = vmatprep.mubr.f32.mxu0 0.0
  %2125 = vmatmul.mubr.f32.gmra.mrb[0].mxu0 %v2035
  %v2126 = vpop.f32.mrb[0].mxu0
  %v2127 = vadd.f32 %v2029, %v2126
  %v2128 = vpop.f32.mrb[0].mxu0
  %2129 = vmatprep.mubr.f32.mxu0 0.0
  %2130 = vmatmul.mubr.f32.gmra.mrb[0].mxu0 %v2038
  %v2131 = vpop.f32.mrb[0].mxu0
  %v2132 = vadd.f32 %v2029, %v2131
  %v2133 = vpop.f32.mrb[0].mxu0
  %2134 = vmatprep.mubr.f32.mxu0 0.0
  %2135 = vmatmul.mubr.f32.gmra.mrb[0].mxu0 %v2041
  %v2136 = vpop.f32.mrb[0].mxu0
  %v2137 = vadd.f32 %v2029, %v2136
  %v2138 = vpop.f32.mrb[0].mxu0
  %2139 = vmatprep.mubr.f32.mxu0 0.0
  %2140 = vmatmul.mubr.f32.gmra.mrb[0].mxu0 %v2044
  %v2141 = vpop.f32.mrb[0].mxu0
  %v2142 = vadd.f32 %v2029, %v2141
  %v2143 = vpop.f32.mrb[0].mxu0
  %2144 = vmatprep.mubr.f32.mxu0 0.0
  %2145 = vmatmul.mubr.f32.gmra.mrb[0].mxu0 %v2047
  %v2146 = vpop.f32.mrb[0].mxu0
  %v2147 = vadd.f32 %v2029, %v2146
  %v2148 = vpop.f32.mrb[0].mxu0
  %2149 = vmatprep.mubr.f32.mxu0 0.0
  %2150 = vmatmul.mubr.f32.gmra.mrb[0].mxu0 %v2050
  %v2151 = vpop.f32.mrb[0].mxu0
  %v2152 = vadd.f32 %v2029, %v2151
  %v2153 = vpop.f32.mrb[0].mxu0
  %2154 = vmatprep.mubr.f32.mxu0 0.0
  %2155 = vmatmul.mubr.f32.gmra.mrb[0].mxu0 %v2053
  %v2156 = vpop.f32.mrb[0].mxu0
  %v2157 = vadd.f32 %v2029, %v2156
  %v2158 = vpop.f32.mrb[0].mxu0
  %2159 = vdwg.mxu0
  %2160 = vst.msk [vmem:[%s9] sm:$0xff] %vm52, %v2122
  %2161 = vst.msk [vmem:[%s9 + $0x8] sm:$0xff] %vm52, %v2127
  %2162 = vst.msk [vmem:[%s9 + $0x10] sm:$0xff] %vm52, %v2132
  %2163 = vst.msk [vmem:[%s9 + $0x18] sm:$0xff] %vm52, %v2137
  %2164 = vst.msk [vmem:[%s9 + $0x20] sm:$0xff] %vm52, %v2142
  %2165 = vst.msk [vmem:[%s9 + $0x28] sm:$0xff] %vm52, %v2147
  %2166 = vst.msk [vmem:[%s9 + $0x30] sm:$0xff] %vm52, %v2152
  %2167 = vst.msk [vmem:[%s9 + $0x38] sm:$0xff] %vm52, %v2157
  // Predicated region
  $region38: #{tpu_custom_call.1} parent=0 // pred_check
    _
  $region39: #{tpu_custom_call.1} parent=0 // pred_check_branch
    %2169 = sbr.rel (0) target = $region41
  $region40: #{tpu_custom_call.1} parent=0 // pred_region
    _
  $region41: #{tpu_custom_call.1} parent=0 // pred_fallthru
    _
  // Predicated region
  $region42: #{tpu_custom_call.1} parent=0 // pred_check
    _
  $region43: #{tpu_custom_call.1} parent=0 // pred_check_branch
    %2171 = sbr.rel (0) target = $region45
  $region44: #{tpu_custom_call.1} parent=0 // pred_region
    _
  $region45: #{tpu_custom_call.1} parent=0 // pred_fallthru
    _

</llo_original>
